<compile_context>
chip_gen: v6e
topology: v6e:2x2x1
jax: 0.10.0
libtpu: 0.0.40
codegen_flags: <defaults>
</compile_context>

<pallas_src>
import jax
import jax.numpy as jnp
from jax.experimental import pallas as pl
from jax.experimental.pallas import tpu as pltpu

# ---- module configuration (matches nn.Module __init__ args) ----
NIN = 4            # nin
KPL = 2            # kernels_per_layer
NOUT = 8           # nout
KSIZE = 3          # kernel_size (square), padding=1
CMID = NIN * KPL   # depthwise output channels
KW2 = 16           # pointwise kernel width (1, 16)
EPS = 1e-5         # BatchNorm eps

# ---- example shapes (W must be >= 128 so the (1,16) pointwise conv is valid) ----
N, H, W = 2, 4, 256
W1 = W // 8                 # width after first AvgPool2d((1, 8))
WP = W1 - KW2 + 1           # width after pointwise conv (valid padding)
W2 = WP // 8                # width after second AvgPool2d((1, 8))
NH = N * H                  # rows per depthwise-channel block (sample-major, then h)
R = CMID * NH               # rows of the fused depthwise slab: r = c*NH + n*H + h

# the halo-via-zero-weight trick reaches exactly one row into the neighbouring block
assert KSIZE == 3 and H >= 2
assert W % 8 == 0 and W1 >= KW2 and W2 >= 1


def _elu(x):
    # clamp so the (unselected) negative branch never produces inf on the EUP
    return jnp.where(x > 0, x, jnp.exp(jnp.minimum(x, 0.0)) - 1.0)


# ----------------------------- fused kernel -----------------------------
def fused_kernel(x_ref, wdw_ref, bdw_ref, p1_ref, bigT_ref, bpw_ref, p2_ref, o_ref):
    # x_ref   : (NIN, N*H, W)        x_r[cin, n*H+h, w] = x[n, cin, h, w]
    # wdw_ref : (R, 9)               per-row depthwise tap weights (BN folded, H-halo taps zeroed)
    # bdw_ref : (R, 1)               depthwise bias + BN shift
    # p1_ref  : (W, W1)              AvgPool(1,8) matrix (block structure, 1/8)
    # bigT_ref: (CMID*W1, NOUT*WP)   pointwise (1,16) conv as Toeplitz matrix (BN folded)
    # bpw_ref : (1, NOUT*WP)         pointwise bias + BN shift
    # p2_ref  : (NOUT*WP, NOUT*W2)   second AvgPool(1,8) matrix
    # o_ref   : (N*H, NOUT*W2)       dense output slab, row = n*H + h, col = o*W2 + w2

    # replicated depthwise slab, row r = c*NH + n*H + h (aligned 8-row pieces -> clean concat)
    xs = jnp.concatenate([x_ref[c // KPL] for c in range(CMID)], axis=0)   # (R, W)
    wdw = wdw_ref[...]                                                     # (R, 9)

    col = jax.lax.broadcasted_iota(jnp.int32, (R, W), 1)
    not_left = col != 0                # x[w-1] exists
    not_right = col != (W - 1)         # x[w+1] exists

    # -------- depthwise 3x3 conv: 9 shifted multiply-adds on the (64, 256) slab --------
    acc = jnp.zeros_like(xs)
    for kh in range(KSIZE):
        if kh == 0:
            src = pltpu.roll(xs, 1, 0)        # row r holds x[h-1]; h==0 rows get zero weight
        elif kh == 1:
            src = xs
        else:
            src = pltpu.roll(xs, R - 1, 0)    # row r holds x[h+1]; h==H-1 rows get zero weight
        t = kh * KSIZE
        acc = acc + jnp.where(not_left, pltpu.roll(src, 1, 1), 0.0) * wdw[:, t:t + 1]
        acc = acc + src * wdw[:, t + 1:t + 2]
        acc = acc + jnp.where(not_right, pltpu.roll(src, W - 1, 1), 0.0) * wdw[:, t + 2:t + 3]

    act = _elu(acc + bdw_ref[...])                                         # (R, W)

    # -------- AvgPool2d((1,8)) on the MXU: (R, W) @ (W, W1) -> (R, W1) --------
    pooled = jnp.dot(act, p1_ref[...], preferred_element_type=jnp.float32)

    # -------- pointwise (1,16) conv: relayout folded into 8 row-aligned block matmuls --------
    # z[n*H+h, o*WP+wp] = sum_c pooled[c*NH + (n*H+h), :] @ bigT[c*W1:(c+1)*W1, :]
    z = jnp.zeros((NH, NOUT * WP), jnp.float32)
    for c in range(CMID):
        z = z + jnp.dot(pooled[c * NH:(c + 1) * NH, :],
                        bigT_ref[pl.ds(c * W1, W1), :],
                        preferred_element_type=jnp.float32)
    z = _elu(z + bpw_ref[...])                                             # (NH, NOUT*WP)

    # -------- second AvgPool2d((1,8)) on the MXU + ONE dense output store --------
    o_ref[...] = jnp.dot(z, p2_ref[...], preferred_element_type=jnp.float32)


# ----------------------------- wrapper -----------------------------
@jax.jit
def depthwise_separable_forward(x, params):
    (dw_w, dw_b, g1, be1, m1, v1, pw_w, pw_b, g2, be2, m2, v2) = params

    # TODO(synk): Dropout is eval-mode identity here; stochastic train-mode dropout not implemented.

    # ---- fold eval-mode BatchNorm into conv weights / biases ----
    s1 = g1 / jnp.sqrt(v1 + EPS)
    t1 = be1 - m1 * s1
    wfold = (dw_w[:, 0, :, :] * s1[:, None, None]).reshape(CMID, KSIZE * KSIZE)   # (CMID, 9)
    bfold = dw_b * s1 + t1                                                        # (CMID,)

    s2 = g2 / jnp.sqrt(v2 + EPS)
    t2 = be2 - m2 * s2
    pwf = pw_w[:, :, 0, :] * s2[:, None, None]                                    # (NOUT, CMID, KW2)
    bpw_vec = pw_b * s2 + t2                                                      # (NOUT,)

    # ---- depthwise slab weights: row = c*NH + n*H + h ; zero taps that would read the H halo ----
    wdw = jnp.repeat(wfold, NH, axis=0)                                           # (R, 9)
    h_row = jnp.arange(R) % H
    kh_tap = jnp.arange(KSIZE * KSIZE) // KSIZE
    tap_ok = ~(((h_row[:, None] == 0) & (kh_tap[None, :] == 0)) |
               ((h_row[:, None] == H - 1) & (kh_tap[None, :] == KSIZE - 1)))
    wdw = wdw * tap_ok.astype(jnp.float32)
    bdw = jnp.repeat(bfold, NH)[:, None]                                          # (R, 1)

    # ---- small constant AvgPool(1,8) matrices ----
    p1 = ((jnp.arange(W)[:, None] // 8) == jnp.arange(W1)[None, :]).astype(jnp.float32) / 8.0
    r_o = jnp.arange(NOUT * WP) // WP
    r_wp = jnp.arange(NOUT * WP) % WP
    c_o = jnp.arange(NOUT * W2) // W2
    c_w2 = jnp.arange(NOUT * W2) % W2
    p2 = ((r_o[:, None] == c_o[None, :]) &
          ((r_wp[:, None] // 8) == c_w2[None, :]) &
          (r_wp[:, None] < W2 * 8)).astype(jnp.float32) / 8.0

    # ---- pointwise conv as one (CMID*W1, NOUT*WP) Toeplitz matrix ----
    kw_idx = jnp.arange(W1)[:, None] - jnp.arange(WP)[None, :]     # (W1, WP) = w1 - wp
    valid = (kw_idx >= 0) & (kw_idx < KW2)
    kw_c = jnp.clip(kw_idx, 0, KW2 - 1)
    T = pwf[:, :, kw_c] * valid[None, None, :, :]                  # (NOUT, CMID, W1, WP)
    bigT = jnp.transpose(T, (1, 2, 0, 3)).reshape(CMID * W1, NOUT * WP)
    bpw = jnp.repeat(bpw_vec, WP)[None, :]                         # (1, NOUT*WP)

    # ---- input slab: (NIN, N*H, W); no kernels-per-layer repeat (done in-kernel) ----
    x_r = jnp.transpose(x, (1, 0, 2, 3)).reshape(NIN, NH, W)

    out2d = pl.pallas_call(
        fused_kernel,
        out_shape=jax.ShapeDtypeStruct((NH, NOUT * W2), jnp.float32),
        grid=(1,),
        in_specs=[
            pl.BlockSpec((NIN, NH, W), lambda i: (0, 0, 0)),
            pl.BlockSpec((R, KSIZE * KSIZE), lambda i: (0, 0)),
            pl.BlockSpec((R, 1), lambda i: (0, 0)),
            pl.BlockSpec((W, W1), lambda i: (0, 0)),
            pl.BlockSpec((CMID * W1, NOUT * WP), lambda i: (0, 0)),
            pl.BlockSpec((1, NOUT * WP), lambda i: (0, 0)),
            pl.BlockSpec((NOUT * WP, NOUT * W2), lambda i: (0, 0)),
        ],
        out_specs=pl.BlockSpec((NH, NOUT * W2), lambda i: (0, 0)),
        compiler_params=pltpu.CompilerParams(dimension_semantics=("arbitrary",)),
    )(x_r, wdw, bdw, p1, bigT, bpw, p2)

    # tiny NCHW permute of the (N, H, NOUT, W2) result handled by XLA inside the jit
    return out2d.reshape(N, H, NOUT, W2).transpose(0, 2, 1, 3)


# ----------------- pure-JAX reference (for correctness check) -----------------
def reference(x, params):
    (dw_w, dw_b, g1, be1, m1, v1, pw_w, pw_b, g2, be2, m2, v2) = params
    y = jax.lax.conv_general_dilated(
        x, dw_w, (1, 1), ((1, 1), (1, 1)),
        dimension_numbers=("NCHW", "OIHW", "NCHW"), feature_group_count=NIN)
    y = y + dw_b[None, :, None, None]
    y = (y - m1[None, :, None, None]) / jnp.sqrt(v1 + EPS)[None, :, None, None] \
        * g1[None, :, None, None] + be1[None, :, None, None]
    y = _elu(y)
    y = y.reshape(N, CMID, H, W1, 8).mean(-1)
    z = jax.lax.conv_general_dilated(
        y, pw_w, (1, 1), "VALID", dimension_numbers=("NCHW", "OIHW", "NCHW"))
    z = z + pw_b[None, :, None, None]
    z = (z - m2[None, :, None, None]) / jnp.sqrt(v2 + EPS)[None, :, None, None] \
        * g2[None, :, None, None] + be2[None, :, None, None]
    z = _elu(z)
    z = z[..., :W2 * 8].reshape(N, NOUT, H, W2, 8).mean(-1)
    return z


if __name__ == "__main__":
    key = jax.random.PRNGKey(0)
    ks = jax.random.split(key, 8)
    x = jax.random.normal(ks[0], (N, NIN, H, W), jnp.float32)

    # deterministic synthetic parameters (shapes follow nn.Conv2d / nn.BatchNorm2d)
    dw_w = 0.2 * jax.random.normal(ks[1], (CMID, 1, KSIZE, KSIZE), jnp.float32)
    dw_b = 0.1 * jax.random.normal(ks[2], (CMID,), jnp.float32)
    g1 = 1.0 + 0.1 * jax.random.normal(ks[3], (CMID,), jnp.float32)
    be1 = 0.1 * jax.random.normal(ks[4], (CMID,), jnp.float32)
    m1 = 0.05 * jax.random.normal(ks[5], (CMID,), jnp.float32)
    v1 = jnp.abs(1.0 + 0.1 * jax.random.normal(ks[6], (CMID,), jnp.float32))

    ks2 = jax.random.split(ks[7], 6)
    pw_w = 0.1 * jax.random.normal(ks2[0], (NOUT, CMID, 1, KW2), jnp.float32)
    pw_b = 0.1 * jax.random.normal(ks2[1], (NOUT,), jnp.float32)
    g2 = 1.0 + 0.1 * jax.random.normal(ks2[2], (NOUT,), jnp.float32)
    be2 = 0.1 * jax.random.normal(ks2[3], (NOUT,), jnp.float32)
    m2 = 0.05 * jax.random.normal(ks2[4], (NOUT,), jnp.float32)
    v2 = jnp.abs(1.0 + 0.1 * jax.random.normal(ks2[5], (NOUT,), jnp.float32))

    params = (dw_w, dw_b, g1, be1, m1, v1, pw_w, pw_b, g2, be2, m2, v2)

    out = depthwise_separable_forward(x, params)
    jax.block_until_ready(out)

    ref = reference(x, params)
    assert out.shape == (N, NOUT, H, W2), out.shape
    assert jnp.allclose(out, ref, atol=1e-4, rtol=1e-4), float(jnp.max(jnp.abs(out - ref)))
    print("KERNEL_OK")
</pallas_src>

<mosaic_0001>
module attributes {stable_mosaic.version = 11 : i64} {
  func.func @fused_kernel(%arg0: i32, %arg1: memref<4x8x256xf32, #tpu.memory_space<vmem>>, %arg2: memref<64x9xf32, #tpu.memory_space<vmem>>, %arg3: memref<64x1xf32, #tpu.memory_space<vmem>>, %arg4: memref<256x32xf32, #tpu.memory_space<vmem>>, %arg5: memref<256x136xf32, #tpu.memory_space<vmem>>, %arg6: memref<1x136xf32, #tpu.memory_space<vmem>>, %arg7: memref<136x16xf32, #tpu.memory_space<vmem>>, %arg8: memref<8x16xf32, #tpu.memory_space<vmem>>) attributes {dimension_semantics = [#tpu.dimension_semantics<arbitrary>], iteration_bounds = array<i64: 1>, scalar_prefetch = 0 : i64, scratch_operands = 0 : i64, tpu.core_type = #tpu.core_type<tc>, window_params = [{pipeline_mode = #tpu.pipeline_mode<synchronous>, transform_indices = @transform_0, window_bounds = array<i64: 4, 8, 256>}, {pipeline_mode = #tpu.pipeline_mode<synchronous>, transform_indices = @transform_1, window_bounds = array<i64: 64, 9>}, {pipeline_mode = #tpu.pipeline_mode<synchronous>, transform_indices = @transform_2, window_bounds = array<i64: 64, 1>}, {pipeline_mode = #tpu.pipeline_mode<synchronous>, transform_indices = @transform_3, window_bounds = array<i64: 256, 32>}, {pipeline_mode = #tpu.pipeline_mode<synchronous>, transform_indices = @transform_4, window_bounds = array<i64: 256, 136>}, {pipeline_mode = #tpu.pipeline_mode<synchronous>, transform_indices = @transform_5, window_bounds = array<i64: 1, 136>}, {pipeline_mode = #tpu.pipeline_mode<synchronous>, transform_indices = @transform_6, window_bounds = array<i64: 136, 16>}, {pipeline_mode = #tpu.pipeline_mode<synchronous>, transform_indices = @transform_7, window_bounds = array<i64: 8, 16>}]} {
    %c0 = arith.constant 0 : index
    %c0_0 = arith.constant 0 : index
    %c0_1 = arith.constant 0 : index
    %0 = vector.load %arg1[%c0, %c0_0, %c0_1] : memref<4x8x256xf32, #tpu.memory_space<vmem>>, vector<1x8x256xf32>
    %1 = vector.shape_cast %0 : vector<1x8x256xf32> to vector<8x256xf32>
    %c0_2 = arith.constant 0 : index
    %c0_3 = arith.constant 0 : index
    %c0_4 = arith.constant 0 : index
    %2 = vector.load %arg1[%c0_2, %c0_3, %c0_4] : memref<4x8x256xf32, #tpu.memory_space<vmem>>, vector<1x8x256xf32>
    %3 = vector.shape_cast %2 : vector<1x8x256xf32> to vector<8x256xf32>
    %c1 = arith.constant 1 : index
    %c0_5 = arith.constant 0 : index
    %c0_6 = arith.constant 0 : index
    %4 = vector.load %arg1[%c1, %c0_5, %c0_6] : memref<4x8x256xf32, #tpu.memory_space<vmem>>, vector<1x8x256xf32>
    %5 = vector.shape_cast %4 : vector<1x8x256xf32> to vector<8x256xf32>
    %c1_7 = arith.constant 1 : index
    %c0_8 = arith.constant 0 : index
    %c0_9 = arith.constant 0 : index
    %6 = vector.load %arg1[%c1_7, %c0_8, %c0_9] : memref<4x8x256xf32, #tpu.memory_space<vmem>>, vector<1x8x256xf32>
    %7 = vector.shape_cast %6 : vector<1x8x256xf32> to vector<8x256xf32>
    %c2 = arith.constant 2 : index
    %c0_10 = arith.constant 0 : index
    %c0_11 = arith.constant 0 : index
    %8 = vector.load %arg1[%c2, %c0_10, %c0_11] : memref<4x8x256xf32, #tpu.memory_space<vmem>>, vector<1x8x256xf32>
    %9 = vector.shape_cast %8 : vector<1x8x256xf32> to vector<8x256xf32>
    %c2_12 = arith.constant 2 : index
    %c0_13 = arith.constant 0 : index
    %c0_14 = arith.constant 0 : index
    %10 = vector.load %arg1[%c2_12, %c0_13, %c0_14] : memref<4x8x256xf32, #tpu.memory_space<vmem>>, vector<1x8x256xf32>
    %11 = vector.shape_cast %10 : vector<1x8x256xf32> to vector<8x256xf32>
    %c3 = arith.constant 3 : index
    %c0_15 = arith.constant 0 : index
    %c0_16 = arith.constant 0 : index
    %12 = vector.load %arg1[%c3, %c0_15, %c0_16] : memref<4x8x256xf32, #tpu.memory_space<vmem>>, vector<1x8x256xf32>
    %13 = vector.shape_cast %12 : vector<1x8x256xf32> to vector<8x256xf32>
    %c3_17 = arith.constant 3 : index
    %c0_18 = arith.constant 0 : index
    %c0_19 = arith.constant 0 : index
    %14 = vector.load %arg1[%c3_17, %c0_18, %c0_19] : memref<4x8x256xf32, #tpu.memory_space<vmem>>, vector<1x8x256xf32>
    %15 = vector.shape_cast %14 : vector<1x8x256xf32> to vector<8x256xf32>
    %16 = tpu.concatenate %1, %3, %5, %7, %9, %11, %13, %15 in 0 : vector<8x256xf32>, vector<8x256xf32>, vector<8x256xf32>, vector<8x256xf32>, vector<8x256xf32>, vector<8x256xf32>, vector<8x256xf32>, vector<8x256xf32> -> vector<64x256xf32>
    %c0_20 = arith.constant 0 : index
    %c0_21 = arith.constant 0 : index
    %17 = vector.load %arg2[%c0_20, %c0_21] : memref<64x9xf32, #tpu.memory_space<vmem>>, vector<64x9xf32>
    %18 = tpu.iota {dimensions = array<i32: 1>} : vector<64x256xi32>
    %c0_i32 = arith.constant 0 : i32
    %19 = vector.broadcast %c0_i32 : i32 to vector<64x256xi32>
    %20 = arith.cmpi ne, %18, %19 : vector<64x256xi32>
    %c255_i32 = arith.constant 255 : i32
    %21 = vector.broadcast %c255_i32 : i32 to vector<64x256xi32>
    %22 = arith.cmpi ne, %18, %21 : vector<64x256xi32>
    %cst = arith.constant 0.000000e+00 : f32
    %23 = vector.broadcast %cst : f32 to vector<64x256xf32>
    %c1_i32 = arith.constant 1 : i32
    %24 = tpu.dynamic_rotate %16 by %c1_i32 dim 0 : vector<64x256xf32>, i32 -> vector<64x256xf32>
    %c1_i32_22 = arith.constant 1 : i32
    %25 = tpu.dynamic_rotate %24 by %c1_i32_22 dim 1 : vector<64x256xf32>, i32 -> vector<64x256xf32>
    %cst_23 = arith.constant 0.000000e+00 : f32
    %26 = vector.broadcast %cst_23 : f32 to vector<64x256xf32>
    %27 = arith.select %20, %25, %26 : vector<64x256xi1>, vector<64x256xf32>
    %28 = vector.extract_strided_slice %17 {offsets = [0, 0], sizes = [64, 1], strides = [1, 1]} : vector<64x9xf32> to vector<64x1xf32>
    %29 = vector.broadcast %28 : vector<64x1xf32> to vector<64x256xf32>
    %30 = arith.mulf %27, %29 : vector<64x256xf32>
    %31 = arith.addf %23, %30 : vector<64x256xf32>
    %32 = vector.extract_strided_slice %17 {offsets = [0, 1], sizes = [64, 1], strides = [1, 1]} : vector<64x9xf32> to vector<64x1xf32>
    %33 = vector.broadcast %32 : vector<64x1xf32> to vector<64x256xf32>
    %34 = arith.mulf %24, %33 : vector<64x256xf32>
    %35 = arith.addf %31, %34 : vector<64x256xf32>
    %c255_i32_24 = arith.constant 255 : i32
    %36 = tpu.dynamic_rotate %24 by %c255_i32_24 dim 1 : vector<64x256xf32>, i32 -> vector<64x256xf32>
    %cst_25 = arith.constant 0.000000e+00 : f32
    %37 = vector.broadcast %cst_25 : f32 to vector<64x256xf32>
    %38 = arith.select %22, %36, %37 : vector<64x256xi1>, vector<64x256xf32>
    %39 = vector.extract_strided_slice %17 {offsets = [0, 2], sizes = [64, 1], strides = [1, 1]} : vector<64x9xf32> to vector<64x1xf32>
    %40 = vector.broadcast %39 : vector<64x1xf32> to vector<64x256xf32>
    %41 = arith.mulf %38, %40 : vector<64x256xf32>
    %42 = arith.addf %35, %41 : vector<64x256xf32>
    %c1_i32_26 = arith.constant 1 : i32
    %43 = tpu.dynamic_rotate %16 by %c1_i32_26 dim 1 : vector<64x256xf32>, i32 -> vector<64x256xf32>
    %cst_27 = arith.constant 0.000000e+00 : f32
    %44 = vector.broadcast %cst_27 : f32 to vector<64x256xf32>
    %45 = arith.select %20, %43, %44 : vector<64x256xi1>, vector<64x256xf32>
    %46 = vector.extract_strided_slice %17 {offsets = [0, 3], sizes = [64, 1], strides = [1, 1]} : vector<64x9xf32> to vector<64x1xf32>
    %47 = vector.broadcast %46 : vector<64x1xf32> to vector<64x256xf32>
    %48 = arith.mulf %45, %47 : vector<64x256xf32>
    %49 = arith.addf %42, %48 : vector<64x256xf32>
    %50 = vector.extract_strided_slice %17 {offsets = [0, 4], sizes = [64, 1], strides = [1, 1]} : vector<64x9xf32> to vector<64x1xf32>
    %51 = vector.broadcast %50 : vector<64x1xf32> to vector<64x256xf32>
    %52 = arith.mulf %16, %51 : vector<64x256xf32>
    %53 = arith.addf %49, %52 : vector<64x256xf32>
    %c255_i32_28 = arith.constant 255 : i32
    %54 = tpu.dynamic_rotate %16 by %c255_i32_28 dim 1 : vector<64x256xf32>, i32 -> vector<64x256xf32>
    %cst_29 = arith.constant 0.000000e+00 : f32
    %55 = vector.broadcast %cst_29 : f32 to vector<64x256xf32>
    %56 = arith.select %22, %54, %55 : vector<64x256xi1>, vector<64x256xf32>
    %57 = vector.extract_strided_slice %17 {offsets = [0, 5], sizes = [64, 1], strides = [1, 1]} : vector<64x9xf32> to vector<64x1xf32>
    %58 = vector.broadcast %57 : vector<64x1xf32> to vector<64x256xf32>
    %59 = arith.mulf %56, %58 : vector<64x256xf32>
    %60 = arith.addf %53, %59 : vector<64x256xf32>
    %c63_i32 = arith.constant 63 : i32
    %61 = tpu.dynamic_rotate %16 by %c63_i32 dim 0 : vector<64x256xf32>, i32 -> vector<64x256xf32>
    %c1_i32_30 = arith.constant 1 : i32
    %62 = tpu.dynamic_rotate %61 by %c1_i32_30 dim 1 : vector<64x256xf32>, i32 -> vector<64x256xf32>
    %cst_31 = arith.constant 0.000000e+00 : f32
    %63 = vector.broadcast %cst_31 : f32 to vector<64x256xf32>
    %64 = arith.select %20, %62, %63 : vector<64x256xi1>, vector<64x256xf32>
    %65 = vector.extract_strided_slice %17 {offsets = [0, 6], sizes = [64, 1], strides = [1, 1]} : vector<64x9xf32> to vector<64x1xf32>
    %66 = vector.broadcast %65 : vector<64x1xf32> to vector<64x256xf32>
    %67 = arith.mulf %64, %66 : vector<64x256xf32>
    %68 = arith.addf %60, %67 : vector<64x256xf32>
    %69 = vector.extract_strided_slice %17 {offsets = [0, 7], sizes = [64, 1], strides = [1, 1]} : vector<64x9xf32> to vector<64x1xf32>
    %70 = vector.broadcast %69 : vector<64x1xf32> to vector<64x256xf32>
    %71 = arith.mulf %61, %70 : vector<64x256xf32>
    %72 = arith.addf %68, %71 : vector<64x256xf32>
    %c255_i32_32 = arith.constant 255 : i32
    %73 = tpu.dynamic_rotate %61 by %c255_i32_32 dim 1 : vector<64x256xf32>, i32 -> vector<64x256xf32>
    %cst_33 = arith.constant 0.000000e+00 : f32
    %74 = vector.broadcast %cst_33 : f32 to vector<64x256xf32>
    %75 = arith.select %22, %73, %74 : vector<64x256xi1>, vector<64x256xf32>
    %76 = vector.extract_strided_slice %17 {offsets = [0, 8], sizes = [64, 1], strides = [1, 1]} : vector<64x9xf32> to vector<64x1xf32>
    %77 = vector.broadcast %76 : vector<64x1xf32> to vector<64x256xf32>
    %78 = arith.mulf %75, %77 : vector<64x256xf32>
    %79 = arith.addf %72, %78 : vector<64x256xf32>
    %c0_34 = arith.constant 0 : index
    %c0_35 = arith.constant 0 : index
    %80 = vector.load %arg3[%c0_34, %c0_35] : memref<64x1xf32, #tpu.memory_space<vmem>>, vector<64x1xf32>
    %81 = vector.broadcast %80 : vector<64x1xf32> to vector<64x256xf32>
    %82 = arith.addf %79, %81 : vector<64x256xf32>
    %cst_36 = arith.constant 0.000000e+00 : f32
    %83 = vector.broadcast %cst_36 : f32 to vector<64x256xf32>
    %84 = arith.cmpf ogt, %82, %83 : vector<64x256xf32>
    %cst_37 = arith.constant 0.000000e+00 : f32
    %85 = vector.broadcast %cst_37 : f32 to vector<64x256xf32>
    %86 = arith.minimumf %82, %85 : vector<64x256xf32>
    %87 = math.exp %86 : vector<64x256xf32>
    %cst_38 = arith.constant 1.000000e+00 : f32
    %88 = vector.broadcast %cst_38 : f32 to vector<64x256xf32>
    %89 = arith.subf %87, %88 : vector<64x256xf32>
    %90 = arith.select %84, %82, %89 : vector<64x256xi1>, vector<64x256xf32>
    %c0_39 = arith.constant 0 : index
    %c0_40 = arith.constant 0 : index
    %91 = vector.load %arg4[%c0_39, %c0_40] : memref<256x32xf32, #tpu.memory_space<vmem>>, vector<256x32xf32>
    %cst_41 = arith.constant dense<0.000000e+00> : vector<64x32xf32>
    %92 = tpu.matmul %90, %91, %cst_41 {dimension_numbers = #tpu.dot_dimension_numbers<[1], [0], [0], [1], [0, 0, 1, 1], [], []>} : vector<64x256xf32>, vector<256x32xf32>, vector<64x32xf32> -> vector<64x32xf32>
    %cst_42 = arith.constant 0.000000e+00 : f32
    %93 = vector.broadcast %cst_42 : f32 to vector<8x136xf32>
    %94 = vector.extract_strided_slice %92 {offsets = [0, 0], sizes = [8, 32], strides = [1, 1]} : vector<64x32xf32> to vector<8x32xf32>
    %c0_43 = arith.constant 0 : index
    %c0_44 = arith.constant 0 : index
    %95 = vector.load %arg5[%c0_43, %c0_44] : memref<256x136xf32, #tpu.memory_space<vmem>>, vector<32x136xf32>
    %cst_45 = arith.constant dense<0.000000e+00> : vector<8x136xf32>
    %96 = tpu.matmul %94, %95, %cst_45 {dimension_numbers = #tpu.dot_dimension_numbers<[1], [0], [0], [1], [0, 0, 1, 1], [], []>} : vector<8x32xf32>, vector<32x136xf32>, vector<8x136xf32> -> vector<8x136xf32>
    %97 = arith.addf %93, %96 : vector<8x136xf32>
    %98 = vector.extract_strided_slice %92 {offsets = [8, 0], sizes = [8, 32], strides = [1, 1]} : vector<64x32xf32> to vector<8x32xf32>
    %c32 = arith.constant 32 : index
    %c0_46 = arith.constant 0 : index
    %99 = vector.load %arg5[%c32, %c0_46] : memref<256x136xf32, #tpu.memory_space<vmem>>, vector<32x136xf32>
    %cst_47 = arith.constant dense<0.000000e+00> : vector<8x136xf32>
    %100 = tpu.matmul %98, %99, %cst_47 {dimension_numbers = #tpu.dot_dimension_numbers<[1], [0], [0], [1], [0, 0, 1, 1], [], []>} : vector<8x32xf32>, vector<32x136xf32>, vector<8x136xf32> -> vector<8x136xf32>
    %101 = arith.addf %97, %100 : vector<8x136xf32>
    %102 = vector.extract_strided_slice %92 {offsets = [16, 0], sizes = [8, 32], strides = [1, 1]} : vector<64x32xf32> to vector<8x32xf32>
    %c64 = arith.constant 64 : index
    %c0_48 = arith.constant 0 : index
    %103 = vector.load %arg5[%c64, %c0_48] : memref<256x136xf32, #tpu.memory_space<vmem>>, vector<32x136xf32>
    %cst_49 = arith.constant dense<0.000000e+00> : vector<8x136xf32>
    %104 = tpu.matmul %102, %103, %cst_49 {dimension_numbers = #tpu.dot_dimension_numbers<[1], [0], [0], [1], [0, 0, 1, 1], [], []>} : vector<8x32xf32>, vector<32x136xf32>, vector<8x136xf32> -> vector<8x136xf32>
    %105 = arith.addf %101, %104 : vector<8x136xf32>
    %106 = vector.extract_strided_slice %92 {offsets = [24, 0], sizes = [8, 32], strides = [1, 1]} : vector<64x32xf32> to vector<8x32xf32>
    %c96 = arith.constant 96 : index
    %c0_50 = arith.constant 0 : index
    %107 = vector.load %arg5[%c96, %c0_50] : memref<256x136xf32, #tpu.memory_space<vmem>>, vector<32x136xf32>
    %cst_51 = arith.constant dense<0.000000e+00> : vector<8x136xf32>
    %108 = tpu.matmul %106, %107, %cst_51 {dimension_numbers = #tpu.dot_dimension_numbers<[1], [0], [0], [1], [0, 0, 1, 1], [], []>} : vector<8x32xf32>, vector<32x136xf32>, vector<8x136xf32> -> vector<8x136xf32>
    %109 = arith.addf %105, %108 : vector<8x136xf32>
    %110 = vector.extract_strided_slice %92 {offsets = [32, 0], sizes = [8, 32], strides = [1, 1]} : vector<64x32xf32> to vector<8x32xf32>
    %c128 = arith.constant 128 : index
    %c0_52 = arith.constant 0 : index
    %111 = vector.load %arg5[%c128, %c0_52] : memref<256x136xf32, #tpu.memory_space<vmem>>, vector<32x136xf32>
    %cst_53 = arith.constant dense<0.000000e+00> : vector<8x136xf32>
    %112 = tpu.matmul %110, %111, %cst_53 {dimension_numbers = #tpu.dot_dimension_numbers<[1], [0], [0], [1], [0, 0, 1, 1], [], []>} : vector<8x32xf32>, vector<32x136xf32>, vector<8x136xf32> -> vector<8x136xf32>
    %113 = arith.addf %109, %112 : vector<8x136xf32>
    %114 = vector.extract_strided_slice %92 {offsets = [40, 0], sizes = [8, 32], strides = [1, 1]} : vector<64x32xf32> to vector<8x32xf32>
    %c160 = arith.constant 160 : index
    %c0_54 = arith.constant 0 : index
    %115 = vector.load %arg5[%c160, %c0_54] : memref<256x136xf32, #tpu.memory_space<vmem>>, vector<32x136xf32>
    %cst_55 = arith.constant dense<0.000000e+00> : vector<8x136xf32>
    %116 = tpu.matmul %114, %115, %cst_55 {dimension_numbers = #tpu.dot_dimension_numbers<[1], [0], [0], [1], [0, 0, 1, 1], [], []>} : vector<8x32xf32>, vector<32x136xf32>, vector<8x136xf32> -> vector<8x136xf32>
    %117 = arith.addf %113, %116 : vector<8x136xf32>
    %118 = vector.extract_strided_slice %92 {offsets = [48, 0], sizes = [8, 32], strides = [1, 1]} : vector<64x32xf32> to vector<8x32xf32>
    %c192 = arith.constant 192 : index
    %c0_56 = arith.constant 0 : index
    %119 = vector.load %arg5[%c192, %c0_56] : memref<256x136xf32, #tpu.memory_space<vmem>>, vector<32x136xf32>
    %cst_57 = arith.constant dense<0.000000e+00> : vector<8x136xf32>
    %120 = tpu.matmul %118, %119, %cst_57 {dimension_numbers = #tpu.dot_dimension_numbers<[1], [0], [0], [1], [0, 0, 1, 1], [], []>} : vector<8x32xf32>, vector<32x136xf32>, vector<8x136xf32> -> vector<8x136xf32>
    %121 = arith.addf %117, %120 : vector<8x136xf32>
    %122 = vector.extract_strided_slice %92 {offsets = [56, 0], sizes = [8, 32], strides = [1, 1]} : vector<64x32xf32> to vector<8x32xf32>
    %c224 = arith.constant 224 : index
    %c0_58 = arith.constant 0 : index
    %123 = vector.load %arg5[%c224, %c0_58] : memref<256x136xf32, #tpu.memory_space<vmem>>, vector<32x136xf32>
    %cst_59 = arith.constant dense<0.000000e+00> : vector<8x136xf32>
    %124 = tpu.matmul %122, %123, %cst_59 {dimension_numbers = #tpu.dot_dimension_numbers<[1], [0], [0], [1], [0, 0, 1, 1], [], []>} : vector<8x32xf32>, vector<32x136xf32>, vector<8x136xf32> -> vector<8x136xf32>
    %125 = arith.addf %121, %124 : vector<8x136xf32>
    %c0_60 = arith.constant 0 : index
    %c0_61 = arith.constant 0 : index
    %126 = vector.load %arg6[%c0_60, %c0_61] : memref<1x136xf32, #tpu.memory_space<vmem>>, vector<1x136xf32>
    %127 = vector.broadcast %126 : vector<1x136xf32> to vector<8x136xf32>
    %128 = arith.addf %125, %127 : vector<8x136xf32>
    %cst_62 = arith.constant 0.000000e+00 : f32
    %129 = vector.broadcast %cst_62 : f32 to vector<8x136xf32>
    %130 = arith.cmpf ogt, %128, %129 : vector<8x136xf32>
    %cst_63 = arith.constant 0.000000e+00 : f32
    %131 = vector.broadcast %cst_63 : f32 to vector<8x136xf32>
    %132 = arith.minimumf %128, %131 : vector<8x136xf32>
    %133 = math.exp %132 : vector<8x136xf32>
    %cst_64 = arith.constant 1.000000e+00 : f32
    %134 = vector.broadcast %cst_64 : f32 to vector<8x136xf32>
    %135 = arith.subf %133, %134 : vector<8x136xf32>
    %136 = arith.select %130, %128, %135 : vector<8x136xi1>, vector<8x136xf32>
    %c0_65 = arith.constant 0 : index
    %c0_66 = arith.constant 0 : index
    %137 = vector.load %arg7[%c0_65, %c0_66] : memref<136x16xf32, #tpu.memory_space<vmem>>, vector<136x16xf32>
    %cst_67 = arith.constant dense<0.000000e+00> : vector<8x16xf32>
    %138 = tpu.matmul %136, %137, %cst_67 {dimension_numbers = #tpu.dot_dimension_numbers<[1], [0], [0], [1], [0, 0, 1, 1], [], []>} : vector<8x136xf32>, vector<136x16xf32>, vector<8x16xf32> -> vector<8x16xf32>
    %c0_68 = arith.constant 0 : index
    %c0_69 = arith.constant 0 : index
    %139 = vector.load %arg8[%c0_68, %c0_69] : memref<8x16xf32, #tpu.memory_space<vmem>>, vector<8x16xf32>
    tpu.vector_store %arg8[%c0_68, %c0_69], %138 {strides = array<i32>} : memref<8x16xf32, #tpu.memory_space<vmem>>, vector<8x16xf32>,
    return
  }
  func.func @transform_0(%arg0: i32) -> (i32, i32, i32) {
    %c0_i32 = arith.constant 0 : i32
    %c0_i32_0 = arith.constant 0 : i32
    %c0_i32_1 = arith.constant 0 : i32
    %c0_i32_2 = arith.constant 0 : i32
    return %c0_i32, %c0_i32_0, %c0_i32_1 : i32, i32, i32
  }
  func.func @transform_1(%arg0: i32) -> (i32, i32) {
    %c0_i32 = arith.constant 0 : i32
    %c0_i32_0 = arith.constant 0 : i32
    %c0_i32_1 = arith.constant 0 : i32
    return %c0_i32, %c0_i32_0 : i32, i32
  }
  func.func @transform_2(%arg0: i32) -> (i32, i32) {
    %c0_i32 = arith.constant 0 : i32
    %c0_i32_0 = arith.constant 0 : i32
    %c0_i32_1 = arith.constant 0 : i32
    return %c0_i32, %c0_i32_0 : i32, i32
  }
  func.func @transform_3(%arg0: i32) -> (i32, i32) {
    %c0_i32 = arith.constant 0 : i32
    %c0_i32_0 = arith.constant 0 : i32
    %c0_i32_1 = arith.constant 0 : i32
    return %c0_i32, %c0_i32_0 : i32, i32
  }
  func.func @transform_4(%arg0: i32) -> (i32, i32) {
    %c0_i32 = arith.constant 0 : i32
    %c0_i32_0 = arith.constant 0 : i32
    %c0_i32_1 = arith.constant 0 : i32
    return %c0_i32, %c0_i32_0 : i32, i32
  }
  func.func @transform_5(%arg0: i32) -> (i32, i32) {
    %c0_i32 = arith.constant 0 : i32
    %c0_i32_0 = arith.constant 0 : i32
    %c0_i32_1 = arith.constant 0 : i32
    return %c0_i32, %c0_i32_0 : i32, i32
  }
  func.func @transform_6(%arg0: i32) -> (i32, i32) {
    %c0_i32 = arith.constant 0 : i32
    %c0_i32_0 = arith.constant 0 : i32
    %c0_i32_1 = arith.constant 0 : i32
    return %c0_i32, %c0_i32_0 : i32, i32
  }
  func.func @transform_7(%arg0: i32) -> (i32, i32) {
    %c0_i32 = arith.constant 0 : i32
    %c0_i32_0 = arith.constant 0 : i32
    %c0_i32_1 = arith.constant 0 : i32
    return %c0_i32, %c0_i32_0 : i32, i32
  }
}

</mosaic_0001>

<llo_original>
// kernel: depthwise_separable_forward.1
$region0: #{depthwise_separable_forward.1}
  #allocation0 [shape = 'u32[]', space=smem, size = 0x4, offset = 0x4, fixed_abs, tag = 'smem constant byte address 0x4 - core index']
  #allocation1 [shape = 'u32[144,128]{1,0:T(1,128)}', space=vmem, size = 0x12000, scoped, tag = 'internal scratch']
  %s0 = inlined_call_operand.vmem [shape: f32[4,8,256], index: 0, kind: input, shape index: {}]
  %s1 = inlined_call_operand.vmem [shape: f32[64,9], index: 1, kind: input, shape index: {}]
  %s2 = inlined_call_operand.vmem [shape: f32[64,1], index: 2, kind: input, shape index: {}]
  %s3 = inlined_call_operand.vmem [shape: f32[256,32], index: 3, kind: input, shape index: {}]
  %s4 = inlined_call_operand.vmem [shape: f32[256,136], index: 4, kind: input, shape index: {}]
  %s5 = inlined_call_operand.vmem [shape: f32[1,136], index: 5, kind: input, shape index: {}]
  %s6 = inlined_call_operand.vmem [shape: f32[136,16], index: 6, kind: input, shape index: {}]
  %s7 = inlined_call_operand.vmem [shape: f32[8,16], index: 7, kind: output, shape index: {}]
  %s8 = sld [smem:[#allocation0]]
  $region38: #{depthwise_separable_forward.1} parent=0
    _
  %s10 = ssub.s32 1, %s8
  %s11 = scalar_select 0, %s10, %s8
  // Predicated region
  $region2: #{depthwise_separable_forward.1} parent=0 // pred_check
    _
  $region3: #{depthwise_separable_forward.1} parent=0 // pred_check_branch
    %13 = sbr.rel (0) target = $region5
  $region4: #{depthwise_separable_forward.1} parent=0 // pred_region
    _
  $region5: #{depthwise_separable_forward.1} parent=0 // pred_fallthru
    _
  // Predicated region
  $region6: #{depthwise_separable_forward.1} parent=0 // pred_check
    _
  $region7: #{depthwise_separable_forward.1} parent=0 // pred_check_branch
    %15 = sbr.rel (0) target = $region9
  $region8: #{depthwise_separable_forward.1} parent=0 // pred_region
    _
  $region9: #{depthwise_separable_forward.1} parent=0 // pred_fallthru
    _
  // Predicated region
  $region10: #{depthwise_separable_forward.1} parent=0 // pred_check
    _
  $region11: #{depthwise_separable_forward.1} parent=0 // pred_check_branch
    %17 = sbr.rel (0) target = $region13
  $region12: #{depthwise_separable_forward.1} parent=0 // pred_region
    _
  $region13: #{depthwise_separable_forward.1} parent=0 // pred_fallthru
    _
  // Predicated region
  $region14: #{depthwise_separable_forward.1} parent=0 // pred_check
    _
  $region15: #{depthwise_separable_forward.1} parent=0 // pred_check_branch
    %19 = sbr.rel (0) target = $region17
  $region16: #{depthwise_separable_forward.1} parent=0 // pred_region
    _
  $region17: #{depthwise_separable_forward.1} parent=0 // pred_fallthru
    _
  // Predicated region
  $region18: #{depthwise_separable_forward.1} parent=0 // pred_check
    _
  $region19: #{depthwise_separable_forward.1} parent=0 // pred_check_branch
    %21 = sbr.rel (0) target = $region21
  $region20: #{depthwise_separable_forward.1} parent=0 // pred_region
    _
  $region21: #{depthwise_separable_forward.1} parent=0 // pred_fallthru
    _
  // Predicated region
  $region22: #{depthwise_separable_forward.1} parent=0 // pred_check
    _
  $region23: #{depthwise_separable_forward.1} parent=0 // pred_check_branch
    %23 = sbr.rel (0) target = $region25
  $region24: #{depthwise_separable_forward.1} parent=0 // pred_region
    _
  $region25: #{depthwise_separable_forward.1} parent=0 // pred_fallthru
    _
  // Predicated region
  $region26: #{depthwise_separable_forward.1} parent=0 // pred_check
    _
  $region27: #{depthwise_separable_forward.1} parent=0 // pred_check_branch
    %25 = sbr.rel (0) target = $region29
  $region28: #{depthwise_separable_forward.1} parent=0 // pred_region
    _
  $region29: #{depthwise_separable_forward.1} parent=0 // pred_fallthru
    _
  %v26 = vld [vmem:[%s0] sm:$0xff]
  %v27 = vld [vmem:[%s0 + $0x8] sm:$0xff]
  %s28 = scalar_lea.vmem %s0, 16
  %v29 = vld [vmem:[%s28] sm:$0xff]
  %v30 = vld [vmem:[%s28 + $0x8] sm:$0xff]
  %s31 = scalar_lea.vmem %s0, 32
  %v32 = vld [vmem:[%s31] sm:$0xff]
  %v33 = vld [vmem:[%s31 + $0x8] sm:$0xff]
  %s34 = scalar_lea.vmem %s0, 48
  %v35 = vld [vmem:[%s34] sm:$0xff]
  %v36 = vld [vmem:[%s34 + $0x8] sm:$0xff]
  %v37 = vld [vmem:[%s1] sm:$0xff]
  %v38 = vld [vmem:[%s1 + $0x8] sm:$0xff]
  %v39 = vld [vmem:[%s1 + $0x10] sm:$0xff]
  %v40 = vld [vmem:[%s1 + $0x18] sm:$0xff]
  %v41 = vld [vmem:[%s1 + $0x20] sm:$0xff]
  %v42 = vld [vmem:[%s1 + $0x28] sm:$0xff]
  %v43 = vld [vmem:[%s1 + $0x30] sm:$0xff]
  %v44 = vld [vmem:[%s1 + $0x38] sm:$0xff]
  %v45 = vlaneseq
  %v46 = vand.u32 %v45, 127
  %v47 = vadd.s32 %v46, 128
  %vm48 = vcmp.ne.s32.totalorder %v46, 0
  %vm49 = vcmp.ne.s32.totalorder %v47, 0
  %vm50 = vcmp.ne.s32.totalorder %v46, 255
  %vm51 = vcmp.ne.s32.totalorder %v47, 255
  %v52 = vrot.slane %v26, 7
  %v53 = vrot.slane %v27, 7
  %v54 = vrot.slane %v29, 7
  %v55 = vrot.slane %v30, 7
  %v56 = vrot.slane %v32, 7
  %v57 = vrot.slane %v33, 7
  %v58 = vrot.slane %v35, 7
  %v59 = vrot.slane %v36, 7
  %v60 = vlaneseq
  %v61 = vshrl.u32 %v60, 7
  %vm62 = vcmp.lt.s32.totalorder %v61, 1
  %v63 = vsel %vm62, %v56, %v58
  %v64 = vsel %vm62, %v57, %v59
  %v65 = vsel %vm62, %v54, %v56
  %v66 = vsel %vm62, %v55, %v57
  %v67 = vsel %vm62, %v52, %v54
  %v68 = vsel %vm62, %v53, %v55
  %v69 = vsel %vm62, %v58, %v52
  %v70 = vsel %vm62, %v59, %v53
  %71 = vrot.lane.b32.xlu0 %v69, 1
  %v72 = vpop.permute.xlu0 %71
  %73 = vrot.lane.b32.xlu0 %v52, 1
  %v74 = vpop.permute.xlu0 %73
  %75 = vrot.lane.b32.xlu0 %v67, 1
  %v76 = vpop.permute.xlu0 %75
  %77 = vrot.lane.b32.xlu0 %v54, 1
  %v78 = vpop.permute.xlu0 %77
  %79 = vrot.lane.b32.xlu0 %v65, 1
  %v80 = vpop.permute.xlu0 %79
  %81 = vrot.lane.b32.xlu0 %v56, 1
  %v82 = vpop.permute.xlu0 %81
  %83 = vrot.lane.b32.xlu0 %v63, 1
  %v84 = vpop.permute.xlu0 %83
  %85 = vrot.lane.b32.xlu0 %v58, 1
  %v86 = vpop.permute.xlu0 %85
  %87 = vrot.lane.b32.xlu0 %v70, 1
  %v88 = vpop.permute.xlu0 %87
  %89 = vrot.lane.b32.xlu0 %v53, 1
  %v90 = vpop.permute.xlu0 %89
  %91 = vrot.lane.b32.xlu0 %v68, 1
  %v92 = vpop.permute.xlu0 %91
  %93 = vrot.lane.b32.xlu0 %v55, 1
  %v94 = vpop.permute.xlu0 %93
  %95 = vrot.lane.b32.xlu0 %v66, 1
  %v96 = vpop.permute.xlu0 %95
  %97 = vrot.lane.b32.xlu0 %v57, 1
  %v98 = vpop.permute.xlu0 %97
  %99 = vrot.lane.b32.xlu0 %v64, 1
  %v100 = vpop.permute.xlu0 %99
  %101 = vrot.lane.b32.xlu0 %v59, 1
  %v102 = vpop.permute.xlu0 %101
  %vm103 = vcmp.lt.s32.totalorder %v46, 1
  %v104 = vsel %vm103, %v72, %v88
  %v105 = vsel %vm103, %v74, %v90
  %v106 = vsel %vm103, %v76, %v92
  %v107 = vsel %vm103, %v78, %v94
  %v108 = vsel %vm103, %v80, %v96
  %v109 = vsel %vm103, %v82, %v98
  %v110 = vsel %vm103, %v84, %v100
  %v111 = vsel %vm103, %v86, %v102
  %v112 = vsel %vm103, %v88, %v72
  %v113 = vsel %vm103, %v90, %v74
  %v114 = vsel %vm103, %v92, %v76
  %v115 = vsel %vm103, %v94, %v78
  %v116 = vsel %vm103, %v96, %v80
  %v117 = vsel %vm103, %v98, %v82
  %v118 = vsel %vm103, %v100, %v84
  %v119 = vsel %vm103, %v102, %v86
  %v120 = vsel %vm48, %v112, 0.0
  %v121 = vsel %vm49, %v104, 0.0
  %v122 = vsel %vm48, %v113, 0.0
  %v123 = vsel %vm49, %v105, 0.0
  %v124 = vsel %vm48, %v114, 0.0
  %v125 = vsel %vm49, %v106, 0.0
  %v126 = vsel %vm48, %v115, 0.0
  %v127 = vsel %vm49, %v107, 0.0
  %v128 = vsel %vm48, %v116, 0.0
  %v129 = vsel %vm49, %v108, 0.0
  %v130 = vsel %vm48, %v117, 0.0
  %v131 = vsel %vm49, %v109, 0.0
  %v132 = vsel %vm48, %v118, 0.0
  %v133 = vsel %vm49, %v110, 0.0
  %v134 = vsel %vm48, %v119, 0.0
  %v135 = vsel %vm49, %v111, 0.0
  %137 = vset.pattern.permute.xlu0 0
  %138 = vperm.xlu0 %137, %v37
  %v139 = vpop.permute.xlu0 %138
  %142 = vset.pattern.permute.xlu0 0
  %143 = vperm.xlu0 %142, %v38
  %v144 = vpop.permute.xlu0 %143
  %147 = vset.pattern.permute.xlu0 0
  %148 = vperm.xlu0 %147, %v39
  %v149 = vpop.permute.xlu0 %148
  %152 = vset.pattern.permute.xlu0 0
  %153 = vperm.xlu0 %152, %v40
  %v154 = vpop.permute.xlu0 %153
  %157 = vset.pattern.permute.xlu0 0
  %158 = vperm.xlu0 %157, %v41
  %v159 = vpop.permute.xlu0 %158
  %162 = vset.pattern.permute.xlu0 0
  %163 = vperm.xlu0 %162, %v42
  %v164 = vpop.permute.xlu0 %163
  %167 = vset.pattern.permute.xlu0 0
  %168 = vperm.xlu0 %167, %v43
  %v169 = vpop.permute.xlu0 %168
  %172 = vset.pattern.permute.xlu0 0
  %173 = vperm.xlu0 %172, %v44
  %v174 = vpop.permute.xlu0 %173
  %v176 = vmul.f32 %v120, %v139
  %v177 = vmul.f32 %v121, %v139
  %v178 = vmul.f32 %v122, %v144
  %v179 = vmul.f32 %v123, %v144
  %v180 = vmul.f32 %v124, %v149
  %v181 = vmul.f32 %v125, %v149
  %v182 = vmul.f32 %v126, %v154
  %v183 = vmul.f32 %v127, %v154
  %v184 = vmul.f32 %v128, %v159
  %v185 = vmul.f32 %v129, %v159
  %v186 = vmul.f32 %v130, %v164
  %v187 = vmul.f32 %v131, %v164
  %v188 = vmul.f32 %v132, %v169
  %v189 = vmul.f32 %v133, %v169
  %v190 = vmul.f32 %v134, %v174
  %v191 = vmul.f32 %v135, %v174
  %v192 = vadd.f32 %v176, 0.0
  %v193 = vadd.f32 %v177, 0.0
  %v194 = vadd.f32 %v178, 0.0
  %v195 = vadd.f32 %v179, 0.0
  %v196 = vadd.f32 %v180, 0.0
  %v197 = vadd.f32 %v181, 0.0
  %v198 = vadd.f32 %v182, 0.0
  %v199 = vadd.f32 %v183, 0.0
  %v200 = vadd.f32 %v184, 0.0
  %v201 = vadd.f32 %v185, 0.0
  %v202 = vadd.f32 %v186, 0.0
  %v203 = vadd.f32 %v187, 0.0
  %v204 = vadd.f32 %v188, 0.0
  %v205 = vadd.f32 %v189, 0.0
  %v206 = vadd.f32 %v190, 0.0
  %v207 = vadd.f32 %v191, 0.0
  %208 = vset.pattern.permute.xlu0 1
  %209 = vperm.xlu0 %208, %v37
  %v210 = vpop.permute.xlu0 %209
  %212 = vset.pattern.permute.xlu0 1
  %213 = vperm.xlu0 %212, %v38
  %v214 = vpop.permute.xlu0 %213
  %216 = vset.pattern.permute.xlu0 1
  %217 = vperm.xlu0 %216, %v39
  %v218 = vpop.permute.xlu0 %217
  %220 = vset.pattern.permute.xlu0 1
  %221 = vperm.xlu0 %220, %v40
  %v222 = vpop.permute.xlu0 %221
  %224 = vset.pattern.permute.xlu0 1
  %225 = vperm.xlu0 %224, %v41
  %v226 = vpop.permute.xlu0 %225
  %228 = vset.pattern.permute.xlu0 1
  %229 = vperm.xlu0 %228, %v42
  %v230 = vpop.permute.xlu0 %229
  %232 = vset.pattern.permute.xlu0 1
  %233 = vperm.xlu0 %232, %v43
  %v234 = vpop.permute.xlu0 %233
  %236 = vset.pattern.permute.xlu0 1
  %237 = vperm.xlu0 %236, %v44
  %v238 = vpop.permute.xlu0 %237
  %v240 = vmul.f32 %v69, %v210
  %v241 = vmul.f32 %v70, %v210
  %v242 = vmul.f32 %v52, %v214
  %v243 = vmul.f32 %v53, %v214
  %v244 = vmul.f32 %v67, %v218
  %v245 = vmul.f32 %v68, %v218
  %v246 = vmul.f32 %v54, %v222
  %v247 = vmul.f32 %v55, %v222
  %v248 = vmul.f32 %v65, %v226
  %v249 = vmul.f32 %v66, %v226
  %v250 = vmul.f32 %v56, %v230
  %v251 = vmul.f32 %v57, %v230
  %v252 = vmul.f32 %v63, %v234
  %v253 = vmul.f32 %v64, %v234
  %v254 = vmul.f32 %v58, %v238
  %v255 = vmul.f32 %v59, %v238
  %v256 = vadd.f32 %v192, %v240
  %v257 = vadd.f32 %v193, %v241
  %v258 = vadd.f32 %v194, %v242
  %v259 = vadd.f32 %v195, %v243
  %v260 = vadd.f32 %v196, %v244
  %v261 = vadd.f32 %v197, %v245
  %v262 = vadd.f32 %v198, %v246
  %v263 = vadd.f32 %v199, %v247
  %v264 = vadd.f32 %v200, %v248
  %v265 = vadd.f32 %v201, %v249
  %v266 = vadd.f32 %v202, %v250
  %v267 = vadd.f32 %v203, %v251
  %v268 = vadd.f32 %v204, %v252
  %v269 = vadd.f32 %v205, %v253
  %v270 = vadd.f32 %v206, %v254
  %v271 = vadd.f32 %v207, %v255
  %272 = vrot.lane.b32.xlu0 %v69, 127
  %v273 = vpop.permute.xlu0 %272
  %274 = vrot.lane.b32.xlu0 %v52, 127
  %v275 = vpop.permute.xlu0 %274
  %276 = vrot.lane.b32.xlu0 %v67, 127
  %v277 = vpop.permute.xlu0 %276
  %278 = vrot.lane.b32.xlu0 %v54, 127
  %v279 = vpop.permute.xlu0 %278
  %280 = vrot.lane.b32.xlu0 %v65, 127
  %v281 = vpop.permute.xlu0 %280
  %282 = vrot.lane.b32.xlu0 %v56, 127
  %v283 = vpop.permute.xlu0 %282
  %284 = vrot.lane.b32.xlu0 %v63, 127
  %v285 = vpop.permute.xlu0 %284
  %286 = vrot.lane.b32.xlu0 %v58, 127
  %v287 = vpop.permute.xlu0 %286
  %288 = vrot.lane.b32.xlu0 %v70, 127
  %v289 = vpop.permute.xlu0 %288
  %290 = vrot.lane.b32.xlu0 %v53, 127
  %v291 = vpop.permute.xlu0 %290
  %292 = vrot.lane.b32.xlu0 %v68, 127
  %v293 = vpop.permute.xlu0 %292
  %294 = vrot.lane.b32.xlu0 %v55, 127
  %v295 = vpop.permute.xlu0 %294
  %296 = vrot.lane.b32.xlu0 %v66, 127
  %v297 = vpop.permute.xlu0 %296
  %298 = vrot.lane.b32.xlu0 %v57, 127
  %v299 = vpop.permute.xlu0 %298
  %300 = vrot.lane.b32.xlu0 %v64, 127
  %v301 = vpop.permute.xlu0 %300
  %302 = vrot.lane.b32.xlu0 %v59, 127
  %v303 = vpop.permute.xlu0 %302
  %vm304 = vcmp.lt.s32.totalorder %v46, 127
  %v305 = vsel %vm304, %v273, %v289
  %v306 = vsel %vm304, %v275, %v291
  %v307 = vsel %vm304, %v277, %v293
  %v308 = vsel %vm304, %v279, %v295
  %v309 = vsel %vm304, %v281, %v297
  %v310 = vsel %vm304, %v283, %v299
  %v311 = vsel %vm304, %v285, %v301
  %v312 = vsel %vm304, %v287, %v303
  %v313 = vsel %vm304, %v289, %v273
  %v314 = vsel %vm304, %v291, %v275
  %v315 = vsel %vm304, %v293, %v277
  %v316 = vsel %vm304, %v295, %v279
  %v317 = vsel %vm304, %v297, %v281
  %v318 = vsel %vm304, %v299, %v283
  %v319 = vsel %vm304, %v301, %v285
  %v320 = vsel %vm304, %v303, %v287
  %v321 = vsel %vm50, %v305, 0.0
  %v322 = vsel %vm51, %v313, 0.0
  %v323 = vsel %vm50, %v306, 0.0
  %v324 = vsel %vm51, %v314, 0.0
  %v325 = vsel %vm50, %v307, 0.0
  %v326 = vsel %vm51, %v315, 0.0
  %v327 = vsel %vm50, %v308, 0.0
  %v328 = vsel %vm51, %v316, 0.0
  %v329 = vsel %vm50, %v309, 0.0
  %v330 = vsel %vm51, %v317, 0.0
  %v331 = vsel %vm50, %v310, 0.0
  %v332 = vsel %vm51, %v318, 0.0
  %v333 = vsel %vm50, %v311, 0.0
  %v334 = vsel %vm51, %v319, 0.0
  %v335 = vsel %vm50, %v312, 0.0
  %v336 = vsel %vm51, %v320, 0.0
  %337 = vset.pattern.permute.xlu0 2
  %338 = vperm.xlu0 %337, %v37
  %v339 = vpop.permute.xlu0 %338
  %341 = vset.pattern.permute.xlu0 2
  %342 = vperm.xlu0 %341, %v38
  %v343 = vpop.permute.xlu0 %342
  %345 = vset.pattern.permute.xlu0 2
  %346 = vperm.xlu0 %345, %v39
  %v347 = vpop.permute.xlu0 %346
  %349 = vset.pattern.permute.xlu0 2
  %350 = vperm.xlu0 %349, %v40
  %v351 = vpop.permute.xlu0 %350
  %353 = vset.pattern.permute.xlu0 2
  %354 = vperm.xlu0 %353, %v41
  %v355 = vpop.permute.xlu0 %354
  %357 = vset.pattern.permute.xlu0 2
  %358 = vperm.xlu0 %357, %v42
  %v359 = vpop.permute.xlu0 %358
  %361 = vset.pattern.permute.xlu0 2
  %362 = vperm.xlu0 %361, %v43
  %v363 = vpop.permute.xlu0 %362
  %365 = vset.pattern.permute.xlu0 2
  %366 = vperm.xlu0 %365, %v44
  %v367 = vpop.permute.xlu0 %366
  %v369 = vmul.f32 %v321, %v339
  %v370 = vmul.f32 %v322, %v339
  %v371 = vmul.f32 %v323, %v343
  %v372 = vmul.f32 %v324, %v343
  %v373 = vmul.f32 %v325, %v347
  %v374 = vmul.f32 %v326, %v347
  %v375 = vmul.f32 %v327, %v351
  %v376 = vmul.f32 %v328, %v351
  %v377 = vmul.f32 %v329, %v355
  %v378 = vmul.f32 %v330, %v355
  %v379 = vmul.f32 %v331, %v359
  %v380 = vmul.f32 %v332, %v359
  %v381 = vmul.f32 %v333, %v363
  %v382 = vmul.f32 %v334, %v363
  %v383 = vmul.f32 %v335, %v367
  %v384 = vmul.f32 %v336, %v367
  %v385 = vadd.f32 %v256, %v369
  %v386 = vadd.f32 %v257, %v370
  %v387 = vadd.f32 %v258, %v371
  %v388 = vadd.f32 %v259, %v372
  %v389 = vadd.f32 %v260, %v373
  %v390 = vadd.f32 %v261, %v374
  %v391 = vadd.f32 %v262, %v375
  %v392 = vadd.f32 %v263, %v376
  %v393 = vadd.f32 %v264, %v377
  %v394 = vadd.f32 %v265, %v378
  %v395 = vadd.f32 %v266, %v379
  %v396 = vadd.f32 %v267, %v380
  %v397 = vadd.f32 %v268, %v381
  %v398 = vadd.f32 %v269, %v382
  %v399 = vadd.f32 %v270, %v383
  %v400 = vadd.f32 %v271, %v384
  %401 = vrot.lane.b32.xlu0 %v26, 1
  %v402 = vpop.permute.xlu0 %401
  %403 = vrot.lane.b32.xlu0 %v29, 1
  %v404 = vpop.permute.xlu0 %403
  %405 = vrot.lane.b32.xlu0 %v32, 1
  %v406 = vpop.permute.xlu0 %405
  %407 = vrot.lane.b32.xlu0 %v35, 1
  %v408 = vpop.permute.xlu0 %407
  %409 = vrot.lane.b32.xlu0 %v27, 1
  %v410 = vpop.permute.xlu0 %409
  %411 = vrot.lane.b32.xlu0 %v30, 1
  %v412 = vpop.permute.xlu0 %411
  %413 = vrot.lane.b32.xlu0 %v33, 1
  %v414 = vpop.permute.xlu0 %413
  %415 = vrot.lane.b32.xlu0 %v36, 1
  %v416 = vpop.permute.xlu0 %415
  %v417 = vsel %vm103, %v402, %v410
  %v418 = vsel %vm103, %v404, %v412
  %v419 = vsel %vm103, %v406, %v414
  %v420 = vsel %vm103, %v408, %v416
  %v421 = vsel %vm103, %v410, %v402
  %v422 = vsel %vm103, %v412, %v404
  %v423 = vsel %vm103, %v414, %v406
  %v424 = vsel %vm103, %v416, %v408
  %v425 = vsel %vm48, %v421, 0.0
  %v426 = vsel %vm49, %v417, 0.0
  %v427 = vsel %vm48, %v422, 0.0
  %v428 = vsel %vm49, %v418, 0.0
  %v429 = vsel %vm48, %v423, 0.0
  %v430 = vsel %vm49, %v419, 0.0
  %v431 = vsel %vm48, %v424, 0.0
  %v432 = vsel %vm49, %v420, 0.0
  %433 = vset.pattern.permute.xlu0 3
  %434 = vperm.xlu0 %433, %v37
  %v435 = vpop.permute.xlu0 %434
  %437 = vset.pattern.permute.xlu0 3
  %438 = vperm.xlu0 %437, %v38
  %v439 = vpop.permute.xlu0 %438
  %441 = vset.pattern.permute.xlu0 3
  %442 = vperm.xlu0 %441, %v39
  %v443 = vpop.permute.xlu0 %442
  %445 = vset.pattern.permute.xlu0 3
  %446 = vperm.xlu0 %445, %v40
  %v447 = vpop.permute.xlu0 %446
  %449 = vset.pattern.permute.xlu0 3
  %450 = vperm.xlu0 %449, %v41
  %v451 = vpop.permute.xlu0 %450
  %453 = vset.pattern.permute.xlu0 3
  %454 = vperm.xlu0 %453, %v42
  %v455 = vpop.permute.xlu0 %454
  %457 = vset.pattern.permute.xlu0 3
  %458 = vperm.xlu0 %457, %v43
  %v459 = vpop.permute.xlu0 %458
  %461 = vset.pattern.permute.xlu0 3
  %462 = vperm.xlu0 %461, %v44
  %v463 = vpop.permute.xlu0 %462
  %v465 = vmul.f32 %v425, %v435
  %v466 = vmul.f32 %v426, %v435
  %v467 = vmul.f32 %v425, %v439
  %v468 = vmul.f32 %v426, %v439
  %v469 = vmul.f32 %v427, %v443
  %v470 = vmul.f32 %v428, %v443
  %v471 = vmul.f32 %v427, %v447
  %v472 = vmul.f32 %v428, %v447
  %v473 = vmul.f32 %v429, %v451
  %v474 = vmul.f32 %v430, %v451
  %v475 = vmul.f32 %v429, %v455
  %v476 = vmul.f32 %v430, %v455
  %v477 = vmul.f32 %v431, %v459
  %v478 = vmul.f32 %v432, %v459
  %v479 = vmul.f32 %v431, %v463
  %v480 = vmul.f32 %v432, %v463
  %v481 = vadd.f32 %v385, %v465
  %v482 = vadd.f32 %v386, %v466
  %v483 = vadd.f32 %v387, %v467
  %v484 = vadd.f32 %v388, %v468
  %v485 = vadd.f32 %v389, %v469
  %v486 = vadd.f32 %v390, %v470
  %v487 = vadd.f32 %v391, %v471
  %v488 = vadd.f32 %v392, %v472
  %v489 = vadd.f32 %v393, %v473
  %v490 = vadd.f32 %v394, %v474
  %v491 = vadd.f32 %v395, %v475
  %v492 = vadd.f32 %v396, %v476
  %v493 = vadd.f32 %v397, %v477
  %v494 = vadd.f32 %v398, %v478
  %v495 = vadd.f32 %v399, %v479
  %v496 = vadd.f32 %v400, %v480
  %497 = vset.pattern.permute.xlu0 4
  %498 = vperm.xlu0 %497, %v37
  %v499 = vpop.permute.xlu0 %498
  %501 = vset.pattern.permute.xlu0 4
  %502 = vperm.xlu0 %501, %v38
  %v503 = vpop.permute.xlu0 %502
  %505 = vset.pattern.permute.xlu0 4
  %506 = vperm.xlu0 %505, %v39
  %v507 = vpop.permute.xlu0 %506
  %509 = vset.pattern.permute.xlu0 4
  %510 = vperm.xlu0 %509, %v40
  %v511 = vpop.permute.xlu0 %510
  %513 = vset.pattern.permute.xlu0 4
  %514 = vperm.xlu0 %513, %v41
  %v515 = vpop.permute.xlu0 %514
  %517 = vset.pattern.permute.xlu0 4
  %518 = vperm.xlu0 %517, %v42
  %v519 = vpop.permute.xlu0 %518
  %521 = vset.pattern.permute.xlu0 4
  %522 = vperm.xlu0 %521, %v43
  %v523 = vpop.permute.xlu0 %522
  %525 = vset.pattern.permute.xlu0 4
  %526 = vperm.xlu0 %525, %v44
  %v527 = vpop.permute.xlu0 %526
  %v529 = vmul.f32 %v26, %v499
  %v530 = vmul.f32 %v27, %v499
  %v531 = vmul.f32 %v26, %v503
  %v532 = vmul.f32 %v27, %v503
  %v533 = vmul.f32 %v29, %v507
  %v534 = vmul.f32 %v30, %v507
  %v535 = vmul.f32 %v29, %v511
  %v536 = vmul.f32 %v30, %v511
  %v537 = vmul.f32 %v32, %v515
  %v538 = vmul.f32 %v33, %v515
  %v539 = vmul.f32 %v32, %v519
  %v540 = vmul.f32 %v33, %v519
  %v541 = vmul.f32 %v35, %v523
  %v542 = vmul.f32 %v36, %v523
  %v543 = vmul.f32 %v35, %v527
  %v544 = vmul.f32 %v36, %v527
  %v545 = vadd.f32 %v481, %v529
  %v546 = vadd.f32 %v482, %v530
  %v547 = vadd.f32 %v483, %v531
  %v548 = vadd.f32 %v484, %v532
  %v549 = vadd.f32 %v485, %v533
  %v550 = vadd.f32 %v486, %v534
  %v551 = vadd.f32 %v487, %v535
  %v552 = vadd.f32 %v488, %v536
  %v553 = vadd.f32 %v489, %v537
  %v554 = vadd.f32 %v490, %v538
  %v555 = vadd.f32 %v491, %v539
  %v556 = vadd.f32 %v492, %v540
  %v557 = vadd.f32 %v493, %v541
  %v558 = vadd.f32 %v494, %v542
  %v559 = vadd.f32 %v495, %v543
  %v560 = vadd.f32 %v496, %v544
  %561 = vrot.lane.b32.xlu0 %v26, 127
  %v562 = vpop.permute.xlu0 %561
  %563 = vrot.lane.b32.xlu0 %v29, 127
  %v564 = vpop.permute.xlu0 %563
  %565 = vrot.lane.b32.xlu0 %v32, 127
  %v566 = vpop.permute.xlu0 %565
  %567 = vrot.lane.b32.xlu0 %v35, 127
  %v568 = vpop.permute.xlu0 %567
  %569 = vrot.lane.b32.xlu0 %v27, 127
  %v570 = vpop.permute.xlu0 %569
  %571 = vrot.lane.b32.xlu0 %v30, 127
  %v572 = vpop.permute.xlu0 %571
  %573 = vrot.lane.b32.xlu0 %v33, 127
  %v574 = vpop.permute.xlu0 %573
  %575 = vrot.lane.b32.xlu0 %v36, 127
  %v576 = vpop.permute.xlu0 %575
  %v577 = vsel %vm304, %v562, %v570
  %v578 = vsel %vm304, %v564, %v572
  %v579 = vsel %vm304, %v566, %v574
  %v580 = vsel %vm304, %v568, %v576
  %v581 = vsel %vm304, %v570, %v562
  %v582 = vsel %vm304, %v572, %v564
  %v583 = vsel %vm304, %v574, %v566
  %v584 = vsel %vm304, %v576, %v568
  %v585 = vsel %vm50, %v577, 0.0
  %v586 = vsel %vm51, %v581, 0.0
  %v587 = vsel %vm50, %v578, 0.0
  %v588 = vsel %vm51, %v582, 0.0
  %v589 = vsel %vm50, %v579, 0.0
  %v590 = vsel %vm51, %v583, 0.0
  %v591 = vsel %vm50, %v580, 0.0
  %v592 = vsel %vm51, %v584, 0.0
  %593 = vset.pattern.permute.xlu0 5
  %594 = vperm.xlu0 %593, %v37
  %v595 = vpop.permute.xlu0 %594
  %597 = vset.pattern.permute.xlu0 5
  %598 = vperm.xlu0 %597, %v38
  %v599 = vpop.permute.xlu0 %598
  %601 = vset.pattern.permute.xlu0 5
  %602 = vperm.xlu0 %601, %v39
  %v603 = vpop.permute.xlu0 %602
  %605 = vset.pattern.permute.xlu0 5
  %606 = vperm.xlu0 %605, %v40
  %v607 = vpop.permute.xlu0 %606
  %609 = vset.pattern.permute.xlu0 5
  %610 = vperm.xlu0 %609, %v41
  %v611 = vpop.permute.xlu0 %610
  %613 = vset.pattern.permute.xlu0 5
  %614 = vperm.xlu0 %613, %v42
  %v615 = vpop.permute.xlu0 %614
  %617 = vset.pattern.permute.xlu0 5
  %618 = vperm.xlu0 %617, %v43
  %v619 = vpop.permute.xlu0 %618
  %621 = vset.pattern.permute.xlu0 5
  %622 = vperm.xlu0 %621, %v44
  %v623 = vpop.permute.xlu0 %622
  %v625 = vmul.f32 %v585, %v595
  %v626 = vmul.f32 %v586, %v595
  %v627 = vmul.f32 %v585, %v599
  %v628 = vmul.f32 %v586, %v599
  %v629 = vmul.f32 %v587, %v603
  %v630 = vmul.f32 %v588, %v603
  %v631 = vmul.f32 %v587, %v607
  %v632 = vmul.f32 %v588, %v607
  %v633 = vmul.f32 %v589, %v611
  %v634 = vmul.f32 %v590, %v611
  %v635 = vmul.f32 %v589, %v615
  %v636 = vmul.f32 %v590, %v615
  %v637 = vmul.f32 %v591, %v619
  %v638 = vmul.f32 %v592, %v619
  %v639 = vmul.f32 %v591, %v623
  %v640 = vmul.f32 %v592, %v623
  %v641 = vadd.f32 %v545, %v625
  %v642 = vadd.f32 %v546, %v626
  %v643 = vadd.f32 %v547, %v627
  %v644 = vadd.f32 %v548, %v628
  %v645 = vadd.f32 %v549, %v629
  %v646 = vadd.f32 %v550, %v630
  %v647 = vadd.f32 %v551, %v631
  %v648 = vadd.f32 %v552, %v632
  %v649 = vadd.f32 %v553, %v633
  %v650 = vadd.f32 %v554, %v634
  %v651 = vadd.f32 %v555, %v635
  %v652 = vadd.f32 %v556, %v636
  %v653 = vadd.f32 %v557, %v637
  %v654 = vadd.f32 %v558, %v638
  %v655 = vadd.f32 %v559, %v639
  %v656 = vadd.f32 %v560, %v640
  %v657 = vrot.slane %v26, 1
  %v658 = vrot.slane %v27, 1
  %v659 = vrot.slane %v29, 1
  %v660 = vrot.slane %v30, 1
  %v661 = vrot.slane %v32, 1
  %v662 = vrot.slane %v33, 1
  %v663 = vrot.slane %v35, 1
  %v664 = vrot.slane %v36, 1
  %vm665 = vcmp.lt.s32.totalorder %v61, 7
  %v666 = vsel %vm665, %v661, %v663
  %v667 = vsel %vm665, %v662, %v664
  %v668 = vsel %vm665, %v659, %v661
  %v669 = vsel %vm665, %v660, %v662
  %v670 = vsel %vm665, %v657, %v659
  %v671 = vsel %vm665, %v658, %v660
  %v672 = vsel %vm665, %v663, %v657
  %v673 = vsel %vm665, %v664, %v658
  %674 = vrot.lane.b32.xlu0 %v657, 1
  %v675 = vpop.permute.xlu0 %674
  %676 = vrot.lane.b32.xlu0 %v670, 1
  %v677 = vpop.permute.xlu0 %676
  %678 = vrot.lane.b32.xlu0 %v659, 1
  %v679 = vpop.permute.xlu0 %678
  %680 = vrot.lane.b32.xlu0 %v668, 1
  %v681 = vpop.permute.xlu0 %680
  %682 = vrot.lane.b32.xlu0 %v661, 1
  %v683 = vpop.permute.xlu0 %682
  %684 = vrot.lane.b32.xlu0 %v666, 1
  %v685 = vpop.permute.xlu0 %684
  %686 = vrot.lane.b32.xlu0 %v663, 1
  %v687 = vpop.permute.xlu0 %686
  %688 = vrot.lane.b32.xlu0 %v672, 1
  %v689 = vpop.permute.xlu0 %688
  %690 = vrot.lane.b32.xlu0 %v658, 1
  %v691 = vpop.permute.xlu0 %690
  %692 = vrot.lane.b32.xlu0 %v671, 1
  %v693 = vpop.permute.xlu0 %692
  %694 = vrot.lane.b32.xlu0 %v660, 1
  %v695 = vpop.permute.xlu0 %694
  %696 = vrot.lane.b32.xlu0 %v669, 1
  %v697 = vpop.permute.xlu0 %696
  %698 = vrot.lane.b32.xlu0 %v662, 1
  %v699 = vpop.permute.xlu0 %698
  %700 = vrot.lane.b32.xlu0 %v667, 1
  %v701 = vpop.permute.xlu0 %700
  %702 = vrot.lane.b32.xlu0 %v664, 1
  %v703 = vpop.permute.xlu0 %702
  %704 = vrot.lane.b32.xlu0 %v673, 1
  %v705 = vpop.permute.xlu0 %704
  %v706 = vsel %vm103, %v675, %v691
  %v707 = vsel %vm103, %v677, %v693
  %v708 = vsel %vm103, %v679, %v695
  %v709 = vsel %vm103, %v681, %v697
  %v710 = vsel %vm103, %v683, %v699
  %v711 = vsel %vm103, %v685, %v701
  %v712 = vsel %vm103, %v687, %v703
  %v713 = vsel %vm103, %v689, %v705
  %v714 = vsel %vm103, %v691, %v675
  %v715 = vsel %vm103, %v693, %v677
  %v716 = vsel %vm103, %v695, %v679
  %v717 = vsel %vm103, %v697, %v681
  %v718 = vsel %vm103, %v699, %v683
  %v719 = vsel %vm103, %v701, %v685
  %v720 = vsel %vm103, %v703, %v687
  %v721 = vsel %vm103, %v705, %v689
  %v722 = vsel %vm48, %v714, 0.0
  %v723 = vsel %vm49, %v706, 0.0
  %v724 = vsel %vm48, %v715, 0.0
  %v725 = vsel %vm49, %v707, 0.0
  %v726 = vsel %vm48, %v716, 0.0
  %v727 = vsel %vm49, %v708, 0.0
  %v728 = vsel %vm48, %v717, 0.0
  %v729 = vsel %vm49, %v709, 0.0
  %v730 = vsel %vm48, %v718, 0.0
  %v731 = vsel %vm49, %v710, 0.0
  %v732 = vsel %vm48, %v719, 0.0
  %v733 = vsel %vm49, %v711, 0.0
  %v734 = vsel %vm48, %v720, 0.0
  %v735 = vsel %vm49, %v712, 0.0
  %v736 = vsel %vm48, %v721, 0.0
  %v737 = vsel %vm49, %v713, 0.0
  %738 = vset.pattern.permute.xlu0 6
  %739 = vperm.xlu0 %738, %v37
  %v740 = vpop.permute.xlu0 %739
  %742 = vset.pattern.permute.xlu0 6
  %743 = vperm.xlu0 %742, %v38
  %v744 = vpop.permute.xlu0 %743
  %746 = vset.pattern.permute.xlu0 6
  %747 = vperm.xlu0 %746, %v39
  %v748 = vpop.permute.xlu0 %747
  %750 = vset.pattern.permute.xlu0 6
  %751 = vperm.xlu0 %750, %v40
  %v752 = vpop.permute.xlu0 %751
  %754 = vset.pattern.permute.xlu0 6
  %755 = vperm.xlu0 %754, %v41
  %v756 = vpop.permute.xlu0 %755
  %758 = vset.pattern.permute.xlu0 6
  %759 = vperm.xlu0 %758, %v42
  %v760 = vpop.permute.xlu0 %759
  %762 = vset.pattern.permute.xlu0 6
  %763 = vperm.xlu0 %762, %v43
  %v764 = vpop.permute.xlu0 %763
  %766 = vset.pattern.permute.xlu0 6
  %767 = vperm.xlu0 %766, %v44
  %v768 = vpop.permute.xlu0 %767
  %v770 = vmul.f32 %v722, %v740
  %v771 = vmul.f32 %v723, %v740
  %v772 = vmul.f32 %v724, %v744
  %v773 = vmul.f32 %v725, %v744
  %v774 = vmul.f32 %v726, %v748
  %v775 = vmul.f32 %v727, %v748
  %v776 = vmul.f32 %v728, %v752
  %v777 = vmul.f32 %v729, %v752
  %v778 = vmul.f32 %v730, %v756
  %v779 = vmul.f32 %v731, %v756
  %v780 = vmul.f32 %v732, %v760
  %v781 = vmul.f32 %v733, %v760
  %v782 = vmul.f32 %v734, %v764
  %v783 = vmul.f32 %v735, %v764
  %v784 = vmul.f32 %v736, %v768
  %v785 = vmul.f32 %v737, %v768
  %v786 = vadd.f32 %v641, %v770
  %v787 = vadd.f32 %v642, %v771
  %v788 = vadd.f32 %v643, %v772
  %v789 = vadd.f32 %v644, %v773
  %v790 = vadd.f32 %v645, %v774
  %v791 = vadd.f32 %v646, %v775
  %v792 = vadd.f32 %v647, %v776
  %v793 = vadd.f32 %v648, %v777
  %v794 = vadd.f32 %v649, %v778
  %v795 = vadd.f32 %v650, %v779
  %v796 = vadd.f32 %v651, %v780
  %v797 = vadd.f32 %v652, %v781
  %v798 = vadd.f32 %v653, %v782
  %v799 = vadd.f32 %v654, %v783
  %v800 = vadd.f32 %v655, %v784
  %v801 = vadd.f32 %v656, %v785
  %802 = vset.pattern.permute.xlu0 7
  %803 = vperm.xlu0 %802, %v37
  %v804 = vpop.permute.xlu0 %803
  %806 = vset.pattern.permute.xlu0 7
  %807 = vperm.xlu0 %806, %v38
  %v808 = vpop.permute.xlu0 %807
  %810 = vset.pattern.permute.xlu0 7
  %811 = vperm.xlu0 %810, %v39
  %v812 = vpop.permute.xlu0 %811
  %814 = vset.pattern.permute.xlu0 7
  %815 = vperm.xlu0 %814, %v40
  %v816 = vpop.permute.xlu0 %815
  %818 = vset.pattern.permute.xlu0 7
  %819 = vperm.xlu0 %818, %v41
  %v820 = vpop.permute.xlu0 %819
  %822 = vset.pattern.permute.xlu0 7
  %823 = vperm.xlu0 %822, %v42
  %v824 = vpop.permute.xlu0 %823
  %826 = vset.pattern.permute.xlu0 7
  %827 = vperm.xlu0 %826, %v43
  %v828 = vpop.permute.xlu0 %827
  %830 = vset.pattern.permute.xlu0 7
  %831 = vperm.xlu0 %830, %v44
  %v832 = vpop.permute.xlu0 %831
  %v834 = vmul.f32 %v657, %v804
  %v835 = vmul.f32 %v658, %v804
  %v836 = vmul.f32 %v670, %v808
  %v837 = vmul.f32 %v671, %v808
  %v838 = vmul.f32 %v659, %v812
  %v839 = vmul.f32 %v660, %v812
  %v840 = vmul.f32 %v668, %v816
  %v841 = vmul.f32 %v669, %v816
  %v842 = vmul.f32 %v661, %v820
  %v843 = vmul.f32 %v662, %v820
  %v844 = vmul.f32 %v666, %v824
  %v845 = vmul.f32 %v667, %v824
  %v846 = vmul.f32 %v663, %v828
  %v847 = vmul.f32 %v664, %v828
  %v848 = vmul.f32 %v672, %v832
  %v849 = vmul.f32 %v673, %v832
  %v850 = vadd.f32 %v786, %v834
  %v851 = vadd.f32 %v787, %v835
  %v852 = vadd.f32 %v788, %v836
  %v853 = vadd.f32 %v789, %v837
  %v854 = vadd.f32 %v790, %v838
  %v855 = vadd.f32 %v791, %v839
  %v856 = vadd.f32 %v792, %v840
  %v857 = vadd.f32 %v793, %v841
  %v858 = vadd.f32 %v794, %v842
  %v859 = vadd.f32 %v795, %v843
  %v860 = vadd.f32 %v796, %v844
  %v861 = vadd.f32 %v797, %v845
  %v862 = vadd.f32 %v798, %v846
  %v863 = vadd.f32 %v799, %v847
  %v864 = vadd.f32 %v800, %v848
  %v865 = vadd.f32 %v801, %v849
  %866 = vrot.lane.b32.xlu0 %v657, 127
  %v867 = vpop.permute.xlu0 %866
  %868 = vrot.lane.b32.xlu0 %v670, 127
  %v869 = vpop.permute.xlu0 %868
  %870 = vrot.lane.b32.xlu0 %v659, 127
  %v871 = vpop.permute.xlu0 %870
  %872 = vrot.lane.b32.xlu0 %v668, 127
  %v873 = vpop.permute.xlu0 %872
  %874 = vrot.lane.b32.xlu0 %v661, 127
  %v875 = vpop.permute.xlu0 %874
  %876 = vrot.lane.b32.xlu0 %v666, 127
  %v877 = vpop.permute.xlu0 %876
  %878 = vrot.lane.b32.xlu0 %v663, 127
  %v879 = vpop.permute.xlu0 %878
  %880 = vrot.lane.b32.xlu0 %v672, 127
  %v881 = vpop.permute.xlu0 %880
  %882 = vrot.lane.b32.xlu0 %v658, 127
  %v883 = vpop.permute.xlu0 %882
  %884 = vrot.lane.b32.xlu0 %v671, 127
  %v885 = vpop.permute.xlu0 %884
  %886 = vrot.lane.b32.xlu0 %v660, 127
  %v887 = vpop.permute.xlu0 %886
  %888 = vrot.lane.b32.xlu0 %v669, 127
  %v889 = vpop.permute.xlu0 %888
  %890 = vrot.lane.b32.xlu0 %v662, 127
  %v891 = vpop.permute.xlu0 %890
  %892 = vrot.lane.b32.xlu0 %v667, 127
  %v893 = vpop.permute.xlu0 %892
  %894 = vrot.lane.b32.xlu0 %v664, 127
  %v895 = vpop.permute.xlu0 %894
  %896 = vrot.lane.b32.xlu0 %v673, 127
  %v897 = vpop.permute.xlu0 %896
  %v898 = vsel %vm304, %v867, %v883
  %v899 = vsel %vm304, %v869, %v885
  %v900 = vsel %vm304, %v871, %v887
  %v901 = vsel %vm304, %v873, %v889
  %v902 = vsel %vm304, %v875, %v891
  %v903 = vsel %vm304, %v877, %v893
  %v904 = vsel %vm304, %v879, %v895
  %v905 = vsel %vm304, %v881, %v897
  %v906 = vsel %vm304, %v883, %v867
  %v907 = vsel %vm304, %v885, %v869
  %v908 = vsel %vm304, %v887, %v871
  %v909 = vsel %vm304, %v889, %v873
  %v910 = vsel %vm304, %v891, %v875
  %v911 = vsel %vm304, %v893, %v877
  %v912 = vsel %vm304, %v895, %v879
  %v913 = vsel %vm304, %v897, %v881
  %v914 = vsel %vm50, %v898, 0.0
  %v915 = vsel %vm51, %v906, 0.0
  %v916 = vsel %vm50, %v899, 0.0
  %v917 = vsel %vm51, %v907, 0.0
  %v918 = vsel %vm50, %v900, 0.0
  %v919 = vsel %vm51, %v908, 0.0
  %v920 = vsel %vm50, %v901, 0.0
  %v921 = vsel %vm51, %v909, 0.0
  %v922 = vsel %vm50, %v902, 0.0
  %v923 = vsel %vm51, %v910, 0.0
  %v924 = vsel %vm50, %v903, 0.0
  %v925 = vsel %vm51, %v911, 0.0
  %v926 = vsel %vm50, %v904, 0.0
  %v927 = vsel %vm51, %v912, 0.0
  %v928 = vsel %vm50, %v905, 0.0
  %v929 = vsel %vm51, %v913, 0.0
  %930 = vset.pattern.permute.xlu0 8
  %931 = vperm.xlu0 %930, %v37
  %v932 = vpop.permute.xlu0 %931
  %934 = vset.pattern.permute.xlu0 8
  %935 = vperm.xlu0 %934, %v38
  %v936 = vpop.permute.xlu0 %935
  %938 = vset.pattern.permute.xlu0 8
  %939 = vperm.xlu0 %938, %v39
  %v940 = vpop.permute.xlu0 %939
  %942 = vset.pattern.permute.xlu0 8
  %943 = vperm.xlu0 %942, %v40
  %v944 = vpop.permute.xlu0 %943
  %946 = vset.pattern.permute.xlu0 8
  %947 = vperm.xlu0 %946, %v41
  %v948 = vpop.permute.xlu0 %947
  %950 = vset.pattern.permute.xlu0 8
  %951 = vperm.xlu0 %950, %v42
  %v952 = vpop.permute.xlu0 %951
  %954 = vset.pattern.permute.xlu0 8
  %955 = vperm.xlu0 %954, %v43
  %v956 = vpop.permute.xlu0 %955
  %958 = vset.pattern.permute.xlu0 8
  %959 = vperm.xlu0 %958, %v44
  %v960 = vpop.permute.xlu0 %959
  %v962 = vmul.f32 %v914, %v932
  %v963 = vmul.f32 %v915, %v932
  %v964 = vmul.f32 %v916, %v936
  %v965 = vmul.f32 %v917, %v936
  %v966 = vmul.f32 %v918, %v940
  %v967 = vmul.f32 %v919, %v940
  %v968 = vmul.f32 %v920, %v944
  %v969 = vmul.f32 %v921, %v944
  %v970 = vmul.f32 %v922, %v948
  %v971 = vmul.f32 %v923, %v948
  %v972 = vmul.f32 %v924, %v952
  %v973 = vmul.f32 %v925, %v952
  %v974 = vmul.f32 %v926, %v956
  %v975 = vmul.f32 %v927, %v956
  %v976 = vmul.f32 %v928, %v960
  %v977 = vmul.f32 %v929, %v960
  %v978 = vadd.f32 %v850, %v962
  %v979 = vadd.f32 %v851, %v963
  %v980 = vadd.f32 %v852, %v964
  %v981 = vadd.f32 %v853, %v965
  %v982 = vadd.f32 %v854, %v966
  %v983 = vadd.f32 %v855, %v967
  %v984 = vadd.f32 %v856, %v968
  %v985 = vadd.f32 %v857, %v969
  %v986 = vadd.f32 %v858, %v970
  %v987 = vadd.f32 %v859, %v971
  %v988 = vadd.f32 %v860, %v972
  %v989 = vadd.f32 %v861, %v973
  %v990 = vadd.f32 %v862, %v974
  %v991 = vadd.f32 %v863, %v975
  %v992 = vadd.f32 %v864, %v976
  %v993 = vadd.f32 %v865, %v977
  %v994 = vld [vmem:[%s2] sm:$0xff]
  %v995 = vld [vmem:[%s2 + $0x8] sm:$0xff]
  %v996 = vld [vmem:[%s2 + $0x10] sm:$0xff]
  %v997 = vld [vmem:[%s2 + $0x18] sm:$0xff]
  %v998 = vld [vmem:[%s2 + $0x20] sm:$0xff]
  %v999 = vld [vmem:[%s2 + $0x28] sm:$0xff]
  %v1000 = vld [vmem:[%s2 + $0x30] sm:$0xff]
  %v1001 = vld [vmem:[%s2 + $0x38] sm:$0xff]
  %1003 = vset.pattern.permute.xlu0 0
  %1004 = vperm.xlu0 %1003, %v994
  %v1005 = vpop.permute.xlu0 %1004
  %1008 = vset.pattern.permute.xlu0 0
  %1009 = vperm.xlu0 %1008, %v995
  %v1010 = vpop.permute.xlu0 %1009
  %1013 = vset.pattern.permute.xlu0 0
  %1014 = vperm.xlu0 %1013, %v996
  %v1015 = vpop.permute.xlu0 %1014
  %1018 = vset.pattern.permute.xlu0 0
  %1019 = vperm.xlu0 %1018, %v997
  %v1020 = vpop.permute.xlu0 %1019
  %1023 = vset.pattern.permute.xlu0 0
  %1024 = vperm.xlu0 %1023, %v998
  %v1025 = vpop.permute.xlu0 %1024
  %1028 = vset.pattern.permute.xlu0 0
  %1029 = vperm.xlu0 %1028, %v999
  %v1030 = vpop.permute.xlu0 %1029
  %1033 = vset.pattern.permute.xlu0 0
  %1034 = vperm.xlu0 %1033, %v1000
  %v1035 = vpop.permute.xlu0 %1034
  %1038 = vset.pattern.permute.xlu0 0
  %1039 = vperm.xlu0 %1038, %v1001
  %v1040 = vpop.permute.xlu0 %1039
  %v1042 = vadd.f32 %v978, %v1005
  %v1043 = vadd.f32 %v979, %v1005
  %v1044 = vadd.f32 %v980, %v1010
  %v1045 = vadd.f32 %v981, %v1010
  %v1046 = vadd.f32 %v982, %v1015
  %v1047 = vadd.f32 %v983, %v1015
  %v1048 = vadd.f32 %v984, %v1020
  %v1049 = vadd.f32 %v985, %v1020
  %v1050 = vadd.f32 %v986, %v1025
  %v1051 = vadd.f32 %v987, %v1025
  %v1052 = vadd.f32 %v988, %v1030
  %v1053 = vadd.f32 %v989, %v1030
  %v1054 = vadd.f32 %v990, %v1035
  %v1055 = vadd.f32 %v991, %v1035
  %v1056 = vadd.f32 %v992, %v1040
  %v1057 = vadd.f32 %v993, %v1040
  %vm1058 = vcmp.gt.f32.partialorder %v1042, 0.0
  %vm1059 = vcmp.gt.f32.partialorder %v1043, 0.0
  %vm1060 = vcmp.gt.f32.partialorder %v1044, 0.0
  %vm1061 = vcmp.gt.f32.partialorder %v1045, 0.0
  %vm1062 = vcmp.gt.f32.partialorder %v1046, 0.0
  %vm1063 = vcmp.gt.f32.partialorder %v1047, 0.0
  %vm1064 = vcmp.gt.f32.partialorder %v1048, 0.0
  %vm1065 = vcmp.gt.f32.partialorder %v1049, 0.0
  %vm1066 = vcmp.gt.f32.partialorder %v1050, 0.0
  %vm1067 = vcmp.gt.f32.partialorder %v1051, 0.0
  %vm1068 = vcmp.gt.f32.partialorder %v1052, 0.0
  %vm1069 = vcmp.gt.f32.partialorder %v1053, 0.0
  %vm1070 = vcmp.gt.f32.partialorder %v1054, 0.0
  %vm1071 = vcmp.gt.f32.partialorder %v1055, 0.0
  %vm1072 = vcmp.gt.f32.partialorder %v1056, 0.0
  %vm1073 = vcmp.gt.f32.partialorder %v1057, 0.0
  %v1074 = vmin.f32 %v1042, 0.0
  %v1075 = vmin.f32 %v1043, 0.0
  %v1076 = vmin.f32 %v1044, 0.0
  %v1077 = vmin.f32 %v1045, 0.0
  %v1078 = vmin.f32 %v1046, 0.0
  %v1079 = vmin.f32 %v1047, 0.0
  %v1080 = vmin.f32 %v1048, 0.0
  %v1081 = vmin.f32 %v1049, 0.0
  %v1082 = vmin.f32 %v1050, 0.0
  %v1083 = vmin.f32 %v1051, 0.0
  %v1084 = vmin.f32 %v1052, 0.0
  %v1085 = vmin.f32 %v1053, 0.0
  %v1086 = vmin.f32 %v1054, 0.0
  %v1087 = vmin.f32 %v1055, 0.0
  %v1088 = vmin.f32 %v1056, 0.0
  %v1089 = vmin.f32 %v1057, 0.0
  %v1090 = vmul.f32 %v1074, 1.442695
  %v1091 = vpow.pop %v1090
  %v1092 = vmul.f32 %v1075, 1.442695
  %v1093 = vpow.pop %v1092
  %v1094 = vmul.f32 %v1076, 1.442695
  %v1095 = vpow.pop %v1094
  %v1096 = vmul.f32 %v1077, 1.442695
  %v1097 = vpow.pop %v1096
  %v1098 = vmul.f32 %v1078, 1.442695
  %v1099 = vpow.pop %v1098
  %v1100 = vmul.f32 %v1079, 1.442695
  %v1101 = vpow.pop %v1100
  %v1102 = vmul.f32 %v1080, 1.442695
  %v1103 = vpow.pop %v1102
  %v1104 = vmul.f32 %v1081, 1.442695
  %v1105 = vpow.pop %v1104
  %v1106 = vmul.f32 %v1082, 1.442695
  %v1107 = vpow.pop %v1106
  %v1108 = vmul.f32 %v1083, 1.442695
  %v1109 = vpow.pop %v1108
  %v1110 = vmul.f32 %v1084, 1.442695
  %v1111 = vpow.pop %v1110
  %v1112 = vmul.f32 %v1085, 1.442695
  %v1113 = vpow.pop %v1112
  %v1114 = vmul.f32 %v1086, 1.442695
  %v1115 = vpow.pop %v1114
  %v1116 = vmul.f32 %v1087, 1.442695
  %v1117 = vpow.pop %v1116
  %v1118 = vmul.f32 %v1088, 1.442695
  %v1119 = vpow.pop %v1118
  %v1120 = vmul.f32 %v1089, 1.442695
  %v1121 = vpow.pop %v1120
  %v1122 = vsub.f32 %v1091, 1.0
  %v1123 = vsub.f32 %v1093, 1.0
  %v1124 = vsub.f32 %v1095, 1.0
  %v1125 = vsub.f32 %v1097, 1.0
  %v1126 = vsub.f32 %v1099, 1.0
  %v1127 = vsub.f32 %v1101, 1.0
  %v1128 = vsub.f32 %v1103, 1.0
  %v1129 = vsub.f32 %v1105, 1.0
  %v1130 = vsub.f32 %v1107, 1.0
  %v1131 = vsub.f32 %v1109, 1.0
  %v1132 = vsub.f32 %v1111, 1.0
  %v1133 = vsub.f32 %v1113, 1.0
  %v1134 = vsub.f32 %v1115, 1.0
  %v1135 = vsub.f32 %v1117, 1.0
  %v1136 = vsub.f32 %v1119, 1.0
  %v1137 = vsub.f32 %v1121, 1.0
  %v1138 = vsel %vm1058, %v1042, %v1122
  %v1139 = vsel %vm1059, %v1043, %v1123
  %v1140 = vsel %vm1060, %v1044, %v1124
  %v1141 = vsel %vm1061, %v1045, %v1125
  %v1142 = vsel %vm1062, %v1046, %v1126
  %v1143 = vsel %vm1063, %v1047, %v1127
  %v1144 = vsel %vm1064, %v1048, %v1128
  %v1145 = vsel %vm1065, %v1049, %v1129
  %v1146 = vsel %vm1066, %v1050, %v1130
  %v1147 = vsel %vm1067, %v1051, %v1131
  %v1148 = vsel %vm1068, %v1052, %v1132
  %v1149 = vsel %vm1069, %v1053, %v1133
  %v1150 = vsel %vm1070, %v1054, %v1134
  %v1151 = vsel %vm1071, %v1055, %v1135
  %v1152 = vsel %vm1072, %v1056, %v1136
  %v1153 = vsel %vm1073, %v1057, %v1137
  %v1154 = vld [vmem:[%s3] sm:$0xff]
  %v1155 = vld [vmem:[%s3 + $0x8] sm:$0xff]
  %v1156 = vld [vmem:[%s3 + $0x10] sm:$0xff]
  %v1157 = vld [vmem:[%s3 + $0x18] sm:$0xff]
  %v1158 = vld [vmem:[%s3 + $0x20] sm:$0xff]
  %v1159 = vld [vmem:[%s3 + $0x28] sm:$0xff]
  %v1160 = vld [vmem:[%s3 + $0x30] sm:$0xff]
  %v1161 = vld [vmem:[%s3 + $0x38] sm:$0xff]
  %v1162 = vld [vmem:[%s3 + $0x40] sm:$0xff]
  %v1163 = vld [vmem:[%s3 + $0x48] sm:$0xff]
  %v1164 = vld [vmem:[%s3 + $0x50] sm:$0xff]
  %v1165 = vld [vmem:[%s3 + $0x58] sm:$0xff]
  %v1166 = vld [vmem:[%s3 + $0x60] sm:$0xff]
  %v1167 = vld [vmem:[%s3 + $0x68] sm:$0xff]
  %v1168 = vld [vmem:[%s3 + $0x70] sm:$0xff]
  %v1169 = vld [vmem:[%s3 + $0x78] sm:$0xff]
  %v1170 = vld [vmem:[%s3 + $0x80] sm:$0xff]
  %v1171 = vld [vmem:[%s3 + $0x88] sm:$0xff]
  %v1172 = vld [vmem:[%s3 + $0x90] sm:$0xff]
  %v1173 = vld [vmem:[%s3 + $0x98] sm:$0xff]
  %v1174 = vld [vmem:[%s3 + $0xa0] sm:$0xff]
  %v1175 = vld [vmem:[%s3 + $0xa8] sm:$0xff]
  %v1176 = vld [vmem:[%s3 + $0xb0] sm:$0xff]
  %v1177 = vld [vmem:[%s3 + $0xb8] sm:$0xff]
  %v1178 = vld [vmem:[%s3 + $0xc0] sm:$0xff]
  %v1179 = vld [vmem:[%s3 + $0xc8] sm:$0xff]
  %v1180 = vld [vmem:[%s3 + $0xd0] sm:$0xff]
  %v1181 = vld [vmem:[%s3 + $0xd8] sm:$0xff]
  %v1182 = vld [vmem:[%s3 + $0xe0] sm:$0xff]
  %v1183 = vld [vmem:[%s3 + $0xe8] sm:$0xff]
  %v1184 = vld [vmem:[%s3 + $0xf0] sm:$0xff]
  %v1185 = vld [vmem:[%s3 + $0xf8] sm:$0xff]
  %1186 = vmatprep.subr.mxu0 0.0
  %1187 = vmatpush1.msra.mxu0 %v1169
  %1188 = vmatprep.subr.mxu0 0.0
  %1189 = vmatpush1.msra.mxu0 %v1168
  %1190 = vmatprep.subr.mxu0 0.0
  %1191 = vmatpush1.msra.mxu0 %v1167
  %1192 = vmatprep.subr.mxu0 0.0
  %1193 = vmatpush1.msra.mxu0 %v1166
  %1194 = vmatprep.subr.mxu0 0.0
  %1195 = vmatpush1.msra.mxu0 %v1165
  %1196 = vmatprep.subr.mxu0 0.0
  %1197 = vmatpush1.msra.mxu0 %v1164
  %1198 = vmatprep.subr.mxu0 0.0
  %1199 = vmatpush1.msra.mxu0 %v1163
  %1200 = vmatprep.subr.mxu0 0.0
  %1201 = vmatpush1.msra.mxu0 %v1162
  %1202 = vmatprep.subr.mxu0 0.0
  %1203 = vmatpush1.msra.mxu0 %v1161
  %1204 = vmatprep.subr.mxu0 0.0
  %1205 = vmatpush1.msra.mxu0 %v1160
  %1206 = vmatprep.subr.mxu0 0.0
  %1207 = vmatpush1.msra.mxu0 %v1159
  %1208 = vmatprep.subr.mxu0 0.0
  %1209 = vmatpush1.msra.mxu0 %v1158
  %1210 = vmatprep.subr.mxu0 0.0
  %1211 = vmatpush1.msra.mxu0 %v1157
  %1212 = vmatprep.subr.mxu0 0.0
  %1213 = vmatpush1.msra.mxu0 %v1156
  %1214 = vmatprep.subr.mxu0 0.0
  %1215 = vmatpush1.msra.mxu0 %v1155
  %1216 = vmatprep.subr.mxu0 0.0
  %1217 = vmatpush1.msra.mxu0 %v1154
  %1218 = vmatprep.subr.mxu0 0.0
  %1219 = vmatpush2.msra.mxu0 %v1185
  %1220 = vmatprep.subr.mxu0 0.0
  %1221 = vmatpush2.msra.mxu0 %v1184
  %1222 = vmatprep.subr.mxu0 0.0
  %1223 = vmatpush2.msra.mxu0 %v1183
  %1224 = vmatprep.subr.mxu0 0.0
  %1225 = vmatpush2.msra.mxu0 %v1182
  %1226 = vmatprep.subr.mxu0 0.0
  %1227 = vmatpush2.msra.mxu0 %v1181
  %1228 = vmatprep.subr.mxu0 0.0
  %1229 = vmatpush2.msra.mxu0 %v1180
  %1230 = vmatprep.subr.mxu0 0.0
  %1231 = vmatpush2.msra.mxu0 %v1179
  %1232 = vmatprep.subr.mxu0 0.0
  %1233 = vmatpush2.msra.mxu0 %v1178
  %1234 = vmatprep.subr.mxu0 0.0
  %1235 = vmatpush2.msra.mxu0 %v1177
  %1236 = vmatprep.subr.mxu0 0.0
  %1237 = vmatpush2.msra.mxu0 %v1176
  %1238 = vmatprep.subr.mxu0 0.0
  %1239 = vmatpush2.msra.mxu0 %v1175
  %1240 = vmatprep.subr.mxu0 0.0
  %1241 = vmatpush2.msra.mxu0 %v1174
  %1242 = vmatprep.subr.mxu0 0.0
  %1243 = vmatpush2.msra.mxu0 %v1173
  %1244 = vmatprep.subr.mxu0 0.0
  %1245 = vmatpush2.msra.mxu0 %v1172
  %1246 = vmatprep.subr.mxu0 0.0
  %1247 = vmatpush2.msra.mxu0 %v1171
  %1248 = vmatprep.subr.mxu0 0.0
  %1249 = vmatpush2.msra.mxu0 %v1170
  %1250 = vmatprep.mubr.f32.mxu0 %v1139
  %1251 = vmatmul.mubr.f32.gmra.mxu0 %v1138
  %v1252 = vpop.f32.mrf.mxu0
  %v1253 = vadd.f32 0.0, %v1252
  %v1254 = vpop.f32.mrf.mxu0
  %1255 = vmatprep.mubr.f32.mxu0 %v1141
  %1256 = vmatmul.mubr.f32.gmra.mxu0 %v1140
  %v1257 = vpop.f32.mrf.mxu0
  %v1258 = vadd.f32 0.0, %v1257
  %v1259 = vpop.f32.mrf.mxu0
  %1260 = vmatprep.mubr.f32.mxu0 %v1143
  %1261 = vmatmul.mubr.f32.gmra.mxu0 %v1142
  %v1262 = vpop.f32.mrf.mxu0
  %v1263 = vadd.f32 0.0, %v1262
  %v1264 = vpop.f32.mrf.mxu0
  %1265 = vmatprep.mubr.f32.mxu0 %v1145
  %1266 = vmatmul.mubr.f32.gmra.mxu0 %v1144
  %v1267 = vpop.f32.mrf.mxu0
  %v1268 = vadd.f32 0.0, %v1267
  %v1269 = vpop.f32.mrf.mxu0
  %1270 = vmatprep.mubr.f32.mxu0 %v1147
  %1271 = vmatmul.mubr.f32.gmra.mxu0 %v1146
  %v1272 = vpop.f32.mrf.mxu0
  %v1273 = vadd.f32 0.0, %v1272
  %v1274 = vpop.f32.mrf.mxu0
  %1275 = vmatprep.mubr.f32.mxu0 %v1149
  %1276 = vmatmul.mubr.f32.gmra.mxu0 %v1148
  %v1277 = vpop.f32.mrf.mxu0
  %v1278 = vadd.f32 0.0, %v1277
  %v1279 = vpop.f32.mrf.mxu0
  %1280 = vmatprep.mubr.f32.mxu0 %v1151
  %1281 = vmatmul.mubr.f32.gmra.mxu0 %v1150
  %v1282 = vpop.f32.mrf.mxu0
  %v1283 = vadd.f32 0.0, %v1282
  %v1284 = vpop.f32.mrf.mxu0
  %1285 = vmatprep.mubr.f32.mxu0 %v1153
  %1286 = vmatmul.mubr.f32.gmra.mxu0 %v1152
  %v1287 = vpop.f32.mrf.mxu0
  %v1288 = vadd.f32 0.0, %v1287
  %v1289 = vpop.f32.mrf.mxu0
  %1290 = vdwg.mxu0
  %v1291 = vld [vmem:[%s4] sm:$0xff]
  %v1292 = vld [vmem:[%s4 + $0x8] sm:$0xff]
  %v1293 = vld [vmem:[%s4 + $0x10] sm:$0xff]
  %v1294 = vld [vmem:[%s4 + $0x18] sm:$0xff]
  %v1295 = vld [vmem:[%s4 + $0x20] sm:$0xff]
  %v1296 = vld [vmem:[%s4 + $0x28] sm:$0xff]
  %v1297 = vld [vmem:[%s4 + $0x30] sm:$0xff]
  %v1298 = vld [vmem:[%s4 + $0x38] sm:$0xff]
  %v1299 = vld [vmem:[%s4 + $0x40] sm:$0xff]
  %v1300 = vld [vmem:[%s4 + $0x48] sm:$0xff]
  %v1301 = vld [vmem:[%s4 + $0x50] sm:$0xff]
  %v1302 = vld [vmem:[%s4 + $0x58] sm:$0xff]
  %v1303 = vld [vmem:[%s4 + $0x60] sm:$0xff]
  %v1304 = vld [vmem:[%s4 + $0x68] sm:$0xff]
  %v1305 = vld [vmem:[%s4 + $0x70] sm:$0xff]
  %v1306 = vld [vmem:[%s4 + $0x78] sm:$0xff]
  %vm1307 = vcmask 261120
  %v1309 = vsel %vm1307, %v1258, 0
  %1311 = vmatprep.subr.mxu0 0.0
  %1312 = vmatpush1.msra.mxu0 0.0
  %1313 = vmatprep.subr.mxu0 0.0
  %1314 = vmatpush1.msra.mxu0 0.0
  %1315 = vmatprep.subr.mxu0 0.0
  %1316 = vmatpush1.msra.mxu0 0.0
  %1317 = vmatprep.subr.mxu0 0.0
  %1318 = vmatpush1.msra.mxu0 0.0
  %1319 = vmatprep.subr.mxu0 0.0
  %1320 = vmatpush1.msra.mxu0 0.0
  %1321 = vmatprep.subr.mxu0 0.0
  %1322 = vmatpush1.msra.mxu0 0.0
  %1323 = vmatprep.subr.mxu0 0.0
  %1324 = vmatpush1.msra.mxu0 0.0
  %1325 = vmatprep.subr.mxu0 0.0
  %1326 = vmatpush1.msra.mxu0 0.0
  %1327 = vmatprep.subr.mxu0 0.0
  %1328 = vmatpush1.msra.mxu0 0.0
  %1329 = vmatprep.subr.mxu0 0.0
  %1330 = vmatpush1.msra.mxu0 0.0
  %1331 = vmatprep.subr.mxu0 0.0
  %1332 = vmatpush1.msra.mxu0 0.0
  %1333 = vmatprep.subr.mxu0 0.0
  %1334 = vmatpush1.msra.mxu0 0.0
  %1335 = vmatprep.subr.mxu0 %v1306
  %1336 = vmatpush1.msra.mxu0 %v1305
  %1337 = vmatprep.subr.mxu0 %v1304
  %1338 = vmatpush1.msra.mxu0 %v1303
  %1339 = vmatprep.subr.mxu0 %v1302
  %1340 = vmatpush1.msra.mxu0 %v1301
  %1341 = vmatprep.subr.mxu0 %v1300
  %1342 = vmatpush1.msra.mxu0 %v1299
  %1343 = vmatprep.subr.mxu0 0.0
  %1344 = vmatpush2.msra.mxu0 0.0
  %1345 = vmatprep.subr.mxu0 0.0
  %1346 = vmatpush2.msra.mxu0 0.0
  %1347 = vmatprep.subr.mxu0 0.0
  %1348 = vmatpush2.msra.mxu0 0.0
  %1349 = vmatprep.subr.mxu0 0.0
  %1350 = vmatpush2.msra.mxu0 0.0
  %1351 = vmatprep.subr.mxu0 0.0
  %1352 = vmatpush2.msra.mxu0 0.0
  %1353 = vmatprep.subr.mxu0 0.0
  %1354 = vmatpush2.msra.mxu0 0.0
  %1355 = vmatprep.subr.mxu0 0.0
  %1356 = vmatpush2.msra.mxu0 0.0
  %1357 = vmatprep.subr.mxu0 0.0
  %1358 = vmatpush2.msra.mxu0 0.0
  %1359 = vmatprep.subr.mxu0 0.0
  %1360 = vmatpush2.msra.mxu0 0.0
  %1361 = vmatprep.subr.mxu0 0.0
  %1362 = vmatpush2.msra.mxu0 0.0
  %1363 = vmatprep.subr.mxu0 0.0
  %1364 = vmatpush2.msra.mxu0 0.0
  %1365 = vmatprep.subr.mxu0 0.0
  %1366 = vmatpush2.msra.mxu0 0.0
  %1367 = vmatprep.subr.mxu0 0.0
  %1368 = vmatpush2.msra.mxu0 0.0
  %1369 = vmatprep.subr.mxu0 0.0
  %1370 = vmatpush2.msra.mxu0 0.0
  %1371 = vmatprep.subr.mxu0 0.0
  %1372 = vmatpush2.msra.mxu0 0.0
  %1373 = vmatprep.subr.mxu0 0.0
  %1374 = vmatpush2.msra.mxu0 0.0
  %1375 = vmatprep.mubr.f32.mxu0 0.0
  %1376 = vmatmul.mubr.f32.gmra.mxu0 %v1309
  %v1377 = vpop.f32.mrf.mxu0
  %v1378 = vadd.f32 0.0, %v1377
  %v1379 = vpop.f32.mrf.mxu0
  %v1380 = vadd.f32 0.0, %v1379
  %1381 = vdwg.mxu0
  %v1383 = vsel %vm1307, %v1253, 0
  %1385 = vmatprep.subr.mxu0 0.0
  %1386 = vmatpush1.msra.mxu0 0.0
  %1387 = vmatprep.subr.mxu0 0.0
  %1388 = vmatpush1.msra.mxu0 0.0
  %1389 = vmatprep.subr.mxu0 0.0
  %1390 = vmatpush1.msra.mxu0 0.0
  %1391 = vmatprep.subr.mxu0 0.0
  %1392 = vmatpush1.msra.mxu0 0.0
  %1393 = vmatprep.subr.mxu0 0.0
  %1394 = vmatpush1.msra.mxu0 0.0
  %1395 = vmatprep.subr.mxu0 0.0
  %1396 = vmatpush1.msra.mxu0 0.0
  %1397 = vmatprep.subr.mxu0 0.0
  %1398 = vmatpush1.msra.mxu0 0.0
  %1399 = vmatprep.subr.mxu0 0.0
  %1400 = vmatpush1.msra.mxu0 0.0
  %1401 = vmatprep.subr.mxu0 0.0
  %1402 = vmatpush1.msra.mxu0 0.0
  %1403 = vmatprep.subr.mxu0 0.0
  %1404 = vmatpush1.msra.mxu0 0.0
  %1405 = vmatprep.subr.mxu0 0.0
  %1406 = vmatpush1.msra.mxu0 0.0
  %1407 = vmatprep.subr.mxu0 0.0
  %1408 = vmatpush1.msra.mxu0 0.0
  %1409 = vmatprep.subr.mxu0 %v1298
  %1410 = vmatpush1.msra.mxu0 %v1297
  %1411 = vmatprep.subr.mxu0 %v1296
  %1412 = vmatpush1.msra.mxu0 %v1295
  %1413 = vmatprep.subr.mxu0 %v1294
  %1414 = vmatpush1.msra.mxu0 %v1293
  %1415 = vmatprep.subr.mxu0 %v1292
  %1416 = vmatpush1.msra.mxu0 %v1291
  %1417 = vmatprep.subr.mxu0 0.0
  %1418 = vmatpush2.msra.mxu0 0.0
  %1419 = vmatprep.subr.mxu0 0.0
  %1420 = vmatpush2.msra.mxu0 0.0
  %1421 = vmatprep.subr.mxu0 0.0
  %1422 = vmatpush2.msra.mxu0 0.0
  %1423 = vmatprep.subr.mxu0 0.0
  %1424 = vmatpush2.msra.mxu0 0.0
  %1425 = vmatprep.subr.mxu0 0.0
  %1426 = vmatpush2.msra.mxu0 0.0
  %1427 = vmatprep.subr.mxu0 0.0
  %1428 = vmatpush2.msra.mxu0 0.0
  %1429 = vmatprep.subr.mxu0 0.0
  %1430 = vmatpush2.msra.mxu0 0.0
  %1431 = vmatprep.subr.mxu0 0.0
  %1432 = vmatpush2.msra.mxu0 0.0
  %1433 = vmatprep.subr.mxu0 0.0
  %1434 = vmatpush2.msra.mxu0 0.0
  %1435 = vmatprep.subr.mxu0 0.0
  %1436 = vmatpush2.msra.mxu0 0.0
  %1437 = vmatprep.subr.mxu0 0.0
  %1438 = vmatpush2.msra.mxu0 0.0
  %1439 = vmatprep.subr.mxu0 0.0
  %1440 = vmatpush2.msra.mxu0 0.0
  %1441 = vmatprep.subr.mxu0 0.0
  %1442 = vmatpush2.msra.mxu0 0.0
  %1443 = vmatprep.subr.mxu0 0.0
  %1444 = vmatpush2.msra.mxu0 0.0
  %1445 = vmatprep.subr.mxu0 0.0
  %1446 = vmatpush2.msra.mxu0 0.0
  %1447 = vmatprep.subr.mxu0 0.0
  %1448 = vmatpush2.msra.mxu0 0.0
  %1449 = vmatprep.mubr.f32.mxu0 0.0
  %1450 = vmatmul.mubr.f32.gmra.mxu0 %v1383
  %v1451 = vpop.f32.mrf.mxu0
  %v1452 = vadd.f32 %v1378, %v1451
  %v1453 = vpop.f32.mrf.mxu0
  %v1454 = vadd.f32 %v1380, %v1453
  %1455 = vdwg.mxu0
  %v1456 = vld [vmem:[%s4 + $0x80] sm:$0xff]
  %v1457 = vld [vmem:[%s4 + $0x88] sm:$0xff]
  %v1458 = vld [vmem:[%s4 + $0x90] sm:$0xff]
  %v1459 = vld [vmem:[%s4 + $0x98] sm:$0xff]
  %v1460 = vld [vmem:[%s4 + $0xa0] sm:$0xff]
  %v1461 = vld [vmem:[%s4 + $0xa8] sm:$0xff]
  %v1462 = vld [vmem:[%s4 + $0xb0] sm:$0xff]
  %v1463 = vld [vmem:[%s4 + $0xb8] sm:$0xff]
  %v1465 = vsel %vm1307, %v1263, 0
  %1467 = vmatprep.subr.mxu0 0.0
  %1468 = vmatpush1.msra.mxu0 0.0
  %1469 = vmatprep.subr.mxu0 0.0
  %1470 = vmatpush1.msra.mxu0 0.0
  %1471 = vmatprep.subr.mxu0 0.0
  %1472 = vmatpush1.msra.mxu0 0.0
  %1473 = vmatprep.subr.mxu0 0.0
  %1474 = vmatpush1.msra.mxu0 0.0
  %1475 = vmatprep.subr.mxu0 0.0
  %1476 = vmatpush1.msra.mxu0 0.0
  %1477 = vmatprep.subr.mxu0 0.0
  %1478 = vmatpush1.msra.mxu0 0.0
  %1479 = vmatprep.subr.mxu0 0.0
  %1480 = vmatpush1.msra.mxu0 0.0
  %1481 = vmatprep.subr.mxu0 0.0
  %1482 = vmatpush1.msra.mxu0 0.0
  %1483 = vmatprep.subr.mxu0 0.0
  %1484 = vmatpush1.msra.mxu0 0.0
  %1485 = vmatprep.subr.mxu0 0.0
  %1486 = vmatpush1.msra.mxu0 0.0
  %1487 = vmatprep.subr.mxu0 0.0
  %1488 = vmatpush1.msra.mxu0 0.0
  %1489 = vmatprep.subr.mxu0 0.0
  %1490 = vmatpush1.msra.mxu0 0.0
  %1491 = vmatprep.subr.mxu0 %v1463
  %1492 = vmatpush1.msra.mxu0 %v1462
  %1493 = vmatprep.subr.mxu0 %v1461
  %1494 = vmatpush1.msra.mxu0 %v1460
  %1495 = vmatprep.subr.mxu0 %v1459
  %1496 = vmatpush1.msra.mxu0 %v1458
  %1497 = vmatprep.subr.mxu0 %v1457
  %1498 = vmatpush1.msra.mxu0 %v1456
  %1499 = vmatprep.subr.mxu0 0.0
  %1500 = vmatpush2.msra.mxu0 0.0
  %1501 = vmatprep.subr.mxu0 0.0
  %1502 = vmatpush2.msra.mxu0 0.0
  %1503 = vmatprep.subr.mxu0 0.0
  %1504 = vmatpush2.msra.mxu0 0.0
  %1505 = vmatprep.subr.mxu0 0.0
  %1506 = vmatpush2.msra.mxu0 0.0
  %1507 = vmatprep.subr.mxu0 0.0
  %1508 = vmatpush2.msra.mxu0 0.0
  %1509 = vmatprep.subr.mxu0 0.0
  %1510 = vmatpush2.msra.mxu0 0.0
  %1511 = vmatprep.subr.mxu0 0.0
  %1512 = vmatpush2.msra.mxu0 0.0
  %1513 = vmatprep.subr.mxu0 0.0
  %1514 = vmatpush2.msra.mxu0 0.0
  %1515 = vmatprep.subr.mxu0 0.0
  %1516 = vmatpush2.msra.mxu0 0.0
  %1517 = vmatprep.subr.mxu0 0.0
  %1518 = vmatpush2.msra.mxu0 0.0
  %1519 = vmatprep.subr.mxu0 0.0
  %1520 = vmatpush2.msra.mxu0 0.0
  %1521 = vmatprep.subr.mxu0 0.0
  %1522 = vmatpush2.msra.mxu0 0.0
  %1523 = vmatprep.subr.mxu0 0.0
  %1524 = vmatpush2.msra.mxu0 0.0
  %1525 = vmatprep.subr.mxu0 0.0
  %1526 = vmatpush2.msra.mxu0 0.0
  %1527 = vmatprep.subr.mxu0 0.0
  %1528 = vmatpush2.msra.mxu0 0.0
  %1529 = vmatprep.subr.mxu0 0.0
  %1530 = vmatpush2.msra.mxu0 0.0
  %1531 = vmatprep.mubr.f32.mxu0 0.0
  %1532 = vmatmul.mubr.f32.gmra.mxu0 %v1465
  %v1533 = vpop.f32.mrf.mxu0
  %v1534 = vadd.f32 0.0, %v1533
  %v1535 = vpop.f32.mrf.mxu0
  %v1536 = vadd.f32 0.0, %v1535
  %1537 = vdwg.mxu0
  %v1538 = vadd.f32 %v1452, %v1534
  %v1539 = vadd.f32 %v1454, %v1536
  %v1540 = vld [vmem:[%s4 + $0xc0] sm:$0xff]
  %v1541 = vld [vmem:[%s4 + $0xc8] sm:$0xff]
  %v1542 = vld [vmem:[%s4 + $0xd0] sm:$0xff]
  %v1543 = vld [vmem:[%s4 + $0xd8] sm:$0xff]
  %v1544 = vld [vmem:[%s4 + $0xe0] sm:$0xff]
  %v1545 = vld [vmem:[%s4 + $0xe8] sm:$0xff]
  %v1546 = vld [vmem:[%s4 + $0xf0] sm:$0xff]
  %v1547 = vld [vmem:[%s4 + $0xf8] sm:$0xff]
  %v1549 = vsel %vm1307, %v1268, 0
  %1551 = vmatprep.subr.mxu0 0.0
  %1552 = vmatpush1.msra.mxu0 0.0
  %1553 = vmatprep.subr.mxu0 0.0
  %1554 = vmatpush1.msra.mxu0 0.0
  %1555 = vmatprep.subr.mxu0 0.0
  %1556 = vmatpush1.msra.mxu0 0.0
  %1557 = vmatprep.subr.mxu0 0.0
  %1558 = vmatpush1.msra.mxu0 0.0
  %1559 = vmatprep.subr.mxu0 0.0
  %1560 = vmatpush1.msra.mxu0 0.0
  %1561 = vmatprep.subr.mxu0 0.0
  %1562 = vmatpush1.msra.mxu0 0.0
  %1563 = vmatprep.subr.mxu0 0.0
  %1564 = vmatpush1.msra.mxu0 0.0
  %1565 = vmatprep.subr.mxu0 0.0
  %1566 = vmatpush1.msra.mxu0 0.0
  %1567 = vmatprep.subr.mxu0 0.0
  %1568 = vmatpush1.msra.mxu0 0.0
  %1569 = vmatprep.subr.mxu0 0.0
  %1570 = vmatpush1.msra.mxu0 0.0
  %1571 = vmatprep.subr.mxu0 0.0
  %1572 = vmatpush1.msra.mxu0 0.0
  %1573 = vmatprep.subr.mxu0 0.0
  %1574 = vmatpush1.msra.mxu0 0.0
  %1575 = vmatprep.subr.mxu0 %v1547
  %1576 = vmatpush1.msra.mxu0 %v1546
  %1577 = vmatprep.subr.mxu0 %v1545
  %1578 = vmatpush1.msra.mxu0 %v1544
  %1579 = vmatprep.subr.mxu0 %v1543
  %1580 = vmatpush1.msra.mxu0 %v1542
  %1581 = vmatprep.subr.mxu0 %v1541
  %1582 = vmatpush1.msra.mxu0 %v1540
  %1583 = vmatprep.subr.mxu0 0.0
  %1584 = vmatpush2.msra.mxu0 0.0
  %1585 = vmatprep.subr.mxu0 0.0
  %1586 = vmatpush2.msra.mxu0 0.0
  %1587 = vmatprep.subr.mxu0 0.0
  %1588 = vmatpush2.msra.mxu0 0.0
  %1589 = vmatprep.subr.mxu0 0.0
  %1590 = vmatpush2.msra.mxu0 0.0
  %1591 = vmatprep.subr.mxu0 0.0
  %1592 = vmatpush2.msra.mxu0 0.0
  %1593 = vmatprep.subr.mxu0 0.0
  %1594 = vmatpush2.msra.mxu0 0.0
  %1595 = vmatprep.subr.mxu0 0.0
  %1596 = vmatpush2.msra.mxu0 0.0
  %1597 = vmatprep.subr.mxu0 0.0
  %1598 = vmatpush2.msra.mxu0 0.0
  %1599 = vmatprep.subr.mxu0 0.0
  %1600 = vmatpush2.msra.mxu0 0.0
  %1601 = vmatprep.subr.mxu0 0.0
  %1602 = vmatpush2.msra.mxu0 0.0
  %1603 = vmatprep.subr.mxu0 0.0
  %1604 = vmatpush2.msra.mxu0 0.0
  %1605 = vmatprep.subr.mxu0 0.0
  %1606 = vmatpush2.msra.mxu0 0.0
  %1607 = vmatprep.subr.mxu0 0.0
  %1608 = vmatpush2.msra.mxu0 0.0
  %1609 = vmatprep.subr.mxu0 0.0
  %1610 = vmatpush2.msra.mxu0 0.0
  %1611 = vmatprep.subr.mxu0 0.0
  %1612 = vmatpush2.msra.mxu0 0.0
  %1613 = vmatprep.subr.mxu0 0.0
  %1614 = vmatpush2.msra.mxu0 0.0
  %1615 = vmatprep.mubr.f32.mxu0 0.0
  %1616 = vmatmul.mubr.f32.gmra.mxu0 %v1549
  %v1617 = vpop.f32.mrf.mxu0
  %v1618 = vadd.f32 0.0, %v1617
  %v1619 = vpop.f32.mrf.mxu0
  %v1620 = vadd.f32 0.0, %v1619
  %1621 = vdwg.mxu0
  %v1622 = vadd.f32 %v1538, %v1618
  %v1623 = vadd.f32 %v1539, %v1620
  %v1624 = vld [vmem:[%s4 + $0x100] sm:$0xff]
  %v1625 = vld [vmem:[%s4 + $0x108] sm:$0xff]
  %v1626 = vld [vmem:[%s4 + $0x110] sm:$0xff]
  %v1627 = vld [vmem:[%s4 + $0x118] sm:$0xff]
  %v1628 = vld [vmem:[%s4 + $0x120] sm:$0xff]
  %v1629 = vld [vmem:[%s4 + $0x128] sm:$0xff]
  %v1630 = vld [vmem:[%s4 + $0x130] sm:$0xff]
  %v1631 = vld [vmem:[%s4 + $0x138] sm:$0xff]
  %v1633 = vsel %vm1307, %v1273, 0
  %1635 = vmatprep.subr.mxu0 0.0
  %1636 = vmatpush1.msra.mxu0 0.0
  %1637 = vmatprep.subr.mxu0 0.0
  %1638 = vmatpush1.msra.mxu0 0.0
  %1639 = vmatprep.subr.mxu0 0.0
  %1640 = vmatpush1.msra.mxu0 0.0
  %1641 = vmatprep.subr.mxu0 0.0
  %1642 = vmatpush1.msra.mxu0 0.0
  %1643 = vmatprep.subr.mxu0 0.0
  %1644 = vmatpush1.msra.mxu0 0.0
  %1645 = vmatprep.subr.mxu0 0.0
  %1646 = vmatpush1.msra.mxu0 0.0
  %1647 = vmatprep.subr.mxu0 0.0
  %1648 = vmatpush1.msra.mxu0 0.0
  %1649 = vmatprep.subr.mxu0 0.0
  %1650 = vmatpush1.msra.mxu0 0.0
  %1651 = vmatprep.subr.mxu0 0.0
  %1652 = vmatpush1.msra.mxu0 0.0
  %1653 = vmatprep.subr.mxu0 0.0
  %1654 = vmatpush1.msra.mxu0 0.0
  %1655 = vmatprep.subr.mxu0 0.0
  %1656 = vmatpush1.msra.mxu0 0.0
  %1657 = vmatprep.subr.mxu0 0.0
  %1658 = vmatpush1.msra.mxu0 0.0
  %1659 = vmatprep.subr.mxu0 %v1631
  %1660 = vmatpush1.msra.mxu0 %v1630
  %1661 = vmatprep.subr.mxu0 %v1629
  %1662 = vmatpush1.msra.mxu0 %v1628
  %1663 = vmatprep.subr.mxu0 %v1627
  %1664 = vmatpush1.msra.mxu0 %v1626
  %1665 = vmatprep.subr.mxu0 %v1625
  %1666 = vmatpush1.msra.mxu0 %v1624
  %1667 = vmatprep.subr.mxu0 0.0
  %1668 = vmatpush2.msra.mxu0 0.0
  %1669 = vmatprep.subr.mxu0 0.0
  %1670 = vmatpush2.msra.mxu0 0.0
  %1671 = vmatprep.subr.mxu0 0.0
  %1672 = vmatpush2.msra.mxu0 0.0
  %1673 = vmatprep.subr.mxu0 0.0
  %1674 = vmatpush2.msra.mxu0 0.0
  %1675 = vmatprep.subr.mxu0 0.0
  %1676 = vmatpush2.msra.mxu0 0.0
  %1677 = vmatprep.subr.mxu0 0.0
  %1678 = vmatpush2.msra.mxu0 0.0
  %1679 = vmatprep.subr.mxu0 0.0
  %1680 = vmatpush2.msra.mxu0 0.0
  %1681 = vmatprep.subr.mxu0 0.0
  %1682 = vmatpush2.msra.mxu0 0.0
  %1683 = vmatprep.subr.mxu0 0.0
  %1684 = vmatpush2.msra.mxu0 0.0
  %1685 = vmatprep.subr.mxu0 0.0
  %1686 = vmatpush2.msra.mxu0 0.0
  %1687 = vmatprep.subr.mxu0 0.0
  %1688 = vmatpush2.msra.mxu0 0.0
  %1689 = vmatprep.subr.mxu0 0.0
  %1690 = vmatpush2.msra.mxu0 0.0
  %1691 = vmatprep.subr.mxu0 0.0
  %1692 = vmatpush2.msra.mxu0 0.0
  %1693 = vmatprep.subr.mxu0 0.0
  %1694 = vmatpush2.msra.mxu0 0.0
  %1695 = vmatprep.subr.mxu0 0.0
  %1696 = vmatpush2.msra.mxu0 0.0
  %1697 = vmatprep.subr.mxu0 0.0
  %1698 = vmatpush2.msra.mxu0 0.0
  %1699 = vmatprep.mubr.f32.mxu0 0.0
  %1700 = vmatmul.mubr.f32.gmra.mxu0 %v1633
  %v1701 = vpop.f32.mrf.mxu0
  %v1702 = vadd.f32 0.0, %v1701
  %v1703 = vpop.f32.mrf.mxu0
  %v1704 = vadd.f32 0.0, %v1703
  %1705 = vdwg.mxu0
  %v1706 = vadd.f32 %v1622, %v1702
  %v1707 = vadd.f32 %v1623, %v1704
  %v1708 = vld [vmem:[%s4 + $0x140] sm:$0xff]
  %v1709 = vld [vmem:[%s4 + $0x148] sm:$0xff]
  %v1710 = vld [vmem:[%s4 + $0x150] sm:$0xff]
  %v1711 = vld [vmem:[%s4 + $0x158] sm:$0xff]
  %v1712 = vld [vmem:[%s4 + $0x160] sm:$0xff]
  %v1713 = vld [vmem:[%s4 + $0x168] sm:$0xff]
  %v1714 = vld [vmem:[%s4 + $0x170] sm:$0xff]
  %v1715 = vld [vmem:[%s4 + $0x178] sm:$0xff]
  %v1717 = vsel %vm1307, %v1278, 0
  %1719 = vmatprep.subr.mxu0 0.0
  %1720 = vmatpush1.msra.mxu0 0.0
  %1721 = vmatprep.subr.mxu0 0.0
  %1722 = vmatpush1.msra.mxu0 0.0
  %1723 = vmatprep.subr.mxu0 0.0
  %1724 = vmatpush1.msra.mxu0 0.0
  %1725 = vmatprep.subr.mxu0 0.0
  %1726 = vmatpush1.msra.mxu0 0.0
  %1727 = vmatprep.subr.mxu0 0.0
  %1728 = vmatpush1.msra.mxu0 0.0
  %1729 = vmatprep.subr.mxu0 0.0
  %1730 = vmatpush1.msra.mxu0 0.0
  %1731 = vmatprep.subr.mxu0 0.0
  %1732 = vmatpush1.msra.mxu0 0.0
  %1733 = vmatprep.subr.mxu0 0.0
  %1734 = vmatpush1.msra.mxu0 0.0
  %1735 = vmatprep.subr.mxu0 0.0
  %1736 = vmatpush1.msra.mxu0 0.0
  %1737 = vmatprep.subr.mxu0 0.0
  %1738 = vmatpush1.msra.mxu0 0.0
  %1739 = vmatprep.subr.mxu0 0.0
  %1740 = vmatpush1.msra.mxu0 0.0
  %1741 = vmatprep.subr.mxu0 0.0
  %1742 = vmatpush1.msra.mxu0 0.0
  %1743 = vmatprep.subr.mxu0 %v1715
  %1744 = vmatpush1.msra.mxu0 %v1714
  %1745 = vmatprep.subr.mxu0 %v1713
  %1746 = vmatpush1.msra.mxu0 %v1712
  %1747 = vmatprep.subr.mxu0 %v1711
  %1748 = vmatpush1.msra.mxu0 %v1710
  %1749 = vmatprep.subr.mxu0 %v1709
  %1750 = vmatpush1.msra.mxu0 %v1708
  %1751 = vmatprep.subr.mxu0 0.0
  %1752 = vmatpush2.msra.mxu0 0.0
  %1753 = vmatprep.subr.mxu0 0.0
  %1754 = vmatpush2.msra.mxu0 0.0
  %1755 = vmatprep.subr.mxu0 0.0
  %1756 = vmatpush2.msra.mxu0 0.0
  %1757 = vmatprep.subr.mxu0 0.0
  %1758 = vmatpush2.msra.mxu0 0.0
  %1759 = vmatprep.subr.mxu0 0.0
  %1760 = vmatpush2.msra.mxu0 0.0
  %1761 = vmatprep.subr.mxu0 0.0
  %1762 = vmatpush2.msra.mxu0 0.0
  %1763 = vmatprep.subr.mxu0 0.0
  %1764 = vmatpush2.msra.mxu0 0.0
  %1765 = vmatprep.subr.mxu0 0.0
  %1766 = vmatpush2.msra.mxu0 0.0
  %1767 = vmatprep.subr.mxu0 0.0
  %1768 = vmatpush2.msra.mxu0 0.0
  %1769 = vmatprep.subr.mxu0 0.0
  %1770 = vmatpush2.msra.mxu0 0.0
  %1771 = vmatprep.subr.mxu0 0.0
  %1772 = vmatpush2.msra.mxu0 0.0
  %1773 = vmatprep.subr.mxu0 0.0
  %1774 = vmatpush2.msra.mxu0 0.0
  %1775 = vmatprep.subr.mxu0 0.0
  %1776 = vmatpush2.msra.mxu0 0.0
  %1777 = vmatprep.subr.mxu0 0.0
  %1778 = vmatpush2.msra.mxu0 0.0
  %1779 = vmatprep.subr.mxu0 0.0
  %1780 = vmatpush2.msra.mxu0 0.0
  %1781 = vmatprep.subr.mxu0 0.0
  %1782 = vmatpush2.msra.mxu0 0.0
  %1783 = vmatprep.mubr.f32.mxu0 0.0
  %1784 = vmatmul.mubr.f32.gmra.mxu0 %v1717
  %v1785 = vpop.f32.mrf.mxu0
  %v1786 = vadd.f32 0.0, %v1785
  %v1787 = vpop.f32.mrf.mxu0
  %v1788 = vadd.f32 0.0, %v1787
  %1789 = vdwg.mxu0
  %v1790 = vadd.f32 %v1706, %v1786
  %v1791 = vadd.f32 %v1707, %v1788
  %v1792 = vld [vmem:[%s4 + $0x180] sm:$0xff]
  %v1793 = vld [vmem:[%s4 + $0x188] sm:$0xff]
  %v1794 = vld [vmem:[%s4 + $0x190] sm:$0xff]
  %v1795 = vld [vmem:[%s4 + $0x198] sm:$0xff]
  %v1796 = vld [vmem:[%s4 + $0x1a0] sm:$0xff]
  %v1797 = vld [vmem:[%s4 + $0x1a8] sm:$0xff]
  %v1798 = vld [vmem:[%s4 + $0x1b0] sm:$0xff]
  %v1799 = vld [vmem:[%s4 + $0x1b8] sm:$0xff]
  %v1801 = vsel %vm1307, %v1283, 0
  %1803 = vmatprep.subr.mxu0 0.0
  %1804 = vmatpush1.msra.mxu0 0.0
  %1805 = vmatprep.subr.mxu0 0.0
  %1806 = vmatpush1.msra.mxu0 0.0
  %1807 = vmatprep.subr.mxu0 0.0
  %1808 = vmatpush1.msra.mxu0 0.0
  %1809 = vmatprep.subr.mxu0 0.0
  %1810 = vmatpush1.msra.mxu0 0.0
  %1811 = vmatprep.subr.mxu0 0.0
  %1812 = vmatpush1.msra.mxu0 0.0
  %1813 = vmatprep.subr.mxu0 0.0
  %1814 = vmatpush1.msra.mxu0 0.0
  %1815 = vmatprep.subr.mxu0 0.0
  %1816 = vmatpush1.msra.mxu0 0.0
  %1817 = vmatprep.subr.mxu0 0.0
  %1818 = vmatpush1.msra.mxu0 0.0
  %1819 = vmatprep.subr.mxu0 0.0
  %1820 = vmatpush1.msra.mxu0 0.0
  %1821 = vmatprep.subr.mxu0 0.0
  %1822 = vmatpush1.msra.mxu0 0.0
  %1823 = vmatprep.subr.mxu0 0.0
  %1824 = vmatpush1.msra.mxu0 0.0
  %1825 = vmatprep.subr.mxu0 0.0
  %1826 = vmatpush1.msra.mxu0 0.0
  %1827 = vmatprep.subr.mxu0 %v1799
  %1828 = vmatpush1.msra.mxu0 %v1798
  %1829 = vmatprep.subr.mxu0 %v1797
  %1830 = vmatpush1.msra.mxu0 %v1796
  %1831 = vmatprep.subr.mxu0 %v1795
  %1832 = vmatpush1.msra.mxu0 %v1794
  %1833 = vmatprep.subr.mxu0 %v1793
  %1834 = vmatpush1.msra.mxu0 %v1792
  %1835 = vmatprep.subr.mxu0 0.0
  %1836 = vmatpush2.msra.mxu0 0.0
  %1837 = vmatprep.subr.mxu0 0.0
  %1838 = vmatpush2.msra.mxu0 0.0
  %1839 = vmatprep.subr.mxu0 0.0
  %1840 = vmatpush2.msra.mxu0 0.0
  %1841 = vmatprep.subr.mxu0 0.0
  %1842 = vmatpush2.msra.mxu0 0.0
  %1843 = vmatprep.subr.mxu0 0.0
  %1844 = vmatpush2.msra.mxu0 0.0
  %1845 = vmatprep.subr.mxu0 0.0
  %1846 = vmatpush2.msra.mxu0 0.0
  %1847 = vmatprep.subr.mxu0 0.0
  %1848 = vmatpush2.msra.mxu0 0.0
  %1849 = vmatprep.subr.mxu0 0.0
  %1850 = vmatpush2.msra.mxu0 0.0
  %1851 = vmatprep.subr.mxu0 0.0
  %1852 = vmatpush2.msra.mxu0 0.0
  %1853 = vmatprep.subr.mxu0 0.0
  %1854 = vmatpush2.msra.mxu0 0.0
  %1855 = vmatprep.subr.mxu0 0.0
  %1856 = vmatpush2.msra.mxu0 0.0
  %1857 = vmatprep.subr.mxu0 0.0
  %1858 = vmatpush2.msra.mxu0 0.0
  %1859 = vmatprep.subr.mxu0 0.0
  %1860 = vmatpush2.msra.mxu0 0.0
  %1861 = vmatprep.subr.mxu0 0.0
  %1862 = vmatpush2.msra.mxu0 0.0
  %1863 = vmatprep.subr.mxu0 0.0
  %1864 = vmatpush2.msra.mxu0 0.0
  %1865 = vmatprep.subr.mxu0 0.0
  %1866 = vmatpush2.msra.mxu0 0.0
  %1867 = vmatprep.mubr.f32.mxu0 0.0
  %1868 = vmatmul.mubr.f32.gmra.mxu0 %v1801
  %v1869 = vpop.f32.mrf.mxu0
  %v1870 = vadd.f32 0.0, %v1869
  %v1871 = vpop.f32.mrf.mxu0
  %v1872 = vadd.f32 0.0, %v1871
  %1873 = vdwg.mxu0
  %v1874 = vadd.f32 %v1790, %v1870
  %v1875 = vadd.f32 %v1791, %v1872
  %v1876 = vld [vmem:[%s4 + $0x1c0] sm:$0xff]
  %v1877 = vld [vmem:[%s4 + $0x1c8] sm:$0xff]
  %v1878 = vld [vmem:[%s4 + $0x1d0] sm:$0xff]
  %v1879 = vld [vmem:[%s4 + $0x1d8] sm:$0xff]
  %v1880 = vld [vmem:[%s4 + $0x1e0] sm:$0xff]
  %v1881 = vld [vmem:[%s4 + $0x1e8] sm:$0xff]
  %v1882 = vld [vmem:[%s4 + $0x1f0] sm:$0xff]
  %v1883 = vld [vmem:[%s4 + $0x1f8] sm:$0xff]
  %v1885 = vsel %vm1307, %v1288, 0
  %1887 = vmatprep.subr.mxu0 0.0
  %1888 = vmatpush1.msra.mxu0 0.0
  %1889 = vmatprep.subr.mxu0 0.0
  %1890 = vmatpush1.msra.mxu0 0.0
  %1891 = vmatprep.subr.mxu0 0.0
  %1892 = vmatpush1.msra.mxu0 0.0
  %1893 = vmatprep.subr.mxu0 0.0
  %1894 = vmatpush1.msra.mxu0 0.0
  %1895 = vmatprep.subr.mxu0 0.0
  %1896 = vmatpush1.msra.mxu0 0.0
  %1897 = vmatprep.subr.mxu0 0.0
  %1898 = vmatpush1.msra.mxu0 0.0
  %1899 = vmatprep.subr.mxu0 0.0
  %1900 = vmatpush1.msra.mxu0 0.0
  %1901 = vmatprep.subr.mxu0 0.0
  %1902 = vmatpush1.msra.mxu0 0.0
  %1903 = vmatprep.subr.mxu0 0.0
  %1904 = vmatpush1.msra.mxu0 0.0
  %1905 = vmatprep.subr.mxu0 0.0
  %1906 = vmatpush1.msra.mxu0 0.0
  %1907 = vmatprep.subr.mxu0 0.0
  %1908 = vmatpush1.msra.mxu0 0.0
  %1909 = vmatprep.subr.mxu0 0.0
  %1910 = vmatpush1.msra.mxu0 0.0
  %1911 = vmatprep.subr.mxu0 %v1883
  %1912 = vmatpush1.msra.mxu0 %v1882
  %1913 = vmatprep.subr.mxu0 %v1881
  %1914 = vmatpush1.msra.mxu0 %v1880
  %1915 = vmatprep.subr.mxu0 %v1879
  %1916 = vmatpush1.msra.mxu0 %v1878
  %1917 = vmatprep.subr.mxu0 %v1877
  %1918 = vmatpush1.msra.mxu0 %v1876
  %1919 = vmatprep.subr.mxu0 0.0
  %1920 = vmatpush2.msra.mxu0 0.0
  %1921 = vmatprep.subr.mxu0 0.0
  %1922 = vmatpush2.msra.mxu0 0.0
  %1923 = vmatprep.subr.mxu0 0.0
  %1924 = vmatpush2.msra.mxu0 0.0
  %1925 = vmatprep.subr.mxu0 0.0
  %1926 = vmatpush2.msra.mxu0 0.0
  %1927 = vmatprep.subr.mxu0 0.0
  %1928 = vmatpush2.msra.mxu0 0.0
  %1929 = vmatprep.subr.mxu0 0.0
  %1930 = vmatpush2.msra.mxu0 0.0
  %1931 = vmatprep.subr.mxu0 0.0
  %1932 = vmatpush2.msra.mxu0 0.0
  %1933 = vmatprep.subr.mxu0 0.0
  %1934 = vmatpush2.msra.mxu0 0.0
  %1935 = vmatprep.subr.mxu0 0.0
  %1936 = vmatpush2.msra.mxu0 0.0
  %1937 = vmatprep.subr.mxu0 0.0
  %1938 = vmatpush2.msra.mxu0 0.0
  %1939 = vmatprep.subr.mxu0 0.0
  %1940 = vmatpush2.msra.mxu0 0.0
  %1941 = vmatprep.subr.mxu0 0.0
  %1942 = vmatpush2.msra.mxu0 0.0
  %1943 = vmatprep.subr.mxu0 0.0
  %1944 = vmatpush2.msra.mxu0 0.0
  %1945 = vmatprep.subr.mxu0 0.0
  %1946 = vmatpush2.msra.mxu0 0.0
  %1947 = vmatprep.subr.mxu0 0.0
  %1948 = vmatpush2.msra.mxu0 0.0
  %1949 = vmatprep.subr.mxu0 0.0
  %1950 = vmatpush2.msra.mxu0 0.0
  %1951 = vmatprep.mubr.f32.mxu0 0.0
  %1952 = vmatmul.mubr.f32.gmra.mxu0 %v1885
  %v1953 = vpop.f32.mrf.mxu0
  %v1954 = vadd.f32 0.0, %v1953
  %v1955 = vpop.f32.mrf.mxu0
  %v1956 = vadd.f32 0.0, %v1955
  %1957 = vdwg.mxu0
  %v1958 = vadd.f32 %v1874, %v1954
  %v1959 = vadd.f32 %v1875, %v1956
  %v1960 = vld [vmem:[%s5] sm:$0x3]
  %v1962 = vlaneseq
  %v1963 = vshrl.u32 %v1962, 7
  %v1964 = vsub.s32 0, %v1963
  %v1965 = vrot.slane %v1960, %v1964
  %v1966 = vlaneseq
  %v1967 = vshrl.u32 %v1966, 7
  %v1968 = vsub.s32 1, %v1967
  %v1969 = vrot.slane %v1960, %v1968
  %v1972 = vadd.f32 %v1958, %v1965
  %v1973 = vadd.f32 %v1959, %v1969
  %vm1974 = vcmp.gt.f32.partialorder %v1972, 0.0
  %vm1975 = vcmp.gt.f32.partialorder %v1973, 0.0
  %v1976 = vmin.f32 %v1972, 0.0
  %v1977 = vmin.f32 %v1973, 0.0
  %v1978 = vmul.f32 %v1976, 1.442695
  %v1979 = vpow.pop %v1978
  %v1980 = vmul.f32 %v1977, 1.442695
  %v1981 = vpow.pop %v1980
  %v1982 = vsub.f32 %v1979, 1.0
  %v1983 = vsub.f32 %v1981, 1.0
  %v1984 = vsel %vm1974, %v1972, %v1982
  %v1985 = vsel %vm1975, %v1973, %v1983
  %v1986 = vld [vmem:[%s6] sm:$0xff]
  %v1987 = vld [vmem:[%s6 + $0x8] sm:$0xff]
  %v1988 = vld [vmem:[%s6 + $0x10] sm:$0xff]
  %v1989 = vld [vmem:[%s6 + $0x18] sm:$0xff]
  %v1990 = vld [vmem:[%s6 + $0x20] sm:$0xff]
  %v1991 = vld [vmem:[%s6 + $0x28] sm:$0xff]
  %v1992 = vld [vmem:[%s6 + $0x30] sm:$0xff]
  %v1993 = vld [vmem:[%s6 + $0x38] sm:$0xff]
  %v1994 = vld [vmem:[%s6 + $0x40] sm:$0xff]
  %v1995 = vld [vmem:[%s6 + $0x48] sm:$0xff]
  %v1996 = vld [vmem:[%s6 + $0x50] sm:$0xff]
  %v1997 = vld [vmem:[%s6 + $0x58] sm:$0xff]
  %v1998 = vld [vmem:[%s6 + $0x60] sm:$0xff]
  %v1999 = vld [vmem:[%s6 + $0x68] sm:$0xff]
  %v2000 = vld [vmem:[%s6 + $0x70] sm:$0xff]
  %v2001 = vld [vmem:[%s6 + $0x78] sm:$0xff]
  %v2002 = vld [vmem:[%s6 + $0x80] sm:$0xff]
  %vm2003 = vcmask 64512
  %v2005 = vsel %vm2003, %v1985, 0
  %2007 = vmatprep.subr.mxu0 0.0
  %2008 = vmatpush1.msra.mxu0 %v2001
  %2009 = vmatprep.subr.mxu0 0.0
  %2010 = vmatpush1.msra.mxu0 %v2000
  %2011 = vmatprep.subr.mxu0 0.0
  %2012 = vmatpush1.msra.mxu0 %v1999
  %2013 = vmatprep.subr.mxu0 0.0
  %2014 = vmatpush1.msra.mxu0 %v1998
  %2015 = vmatprep.subr.mxu0 0.0
  %2016 = vmatpush1.msra.mxu0 %v1997
  %2017 = vmatprep.subr.mxu0 0.0
  %2018 = vmatpush1.msra.mxu0 %v1996
  %2019 = vmatprep.subr.mxu0 0.0
  %2020 = vmatpush1.msra.mxu0 %v1995
  %2021 = vmatprep.subr.mxu0 0.0
  %2022 = vmatpush1.msra.mxu0 %v1994
  %2023 = vmatprep.subr.mxu0 0.0
  %2024 = vmatpush1.msra.mxu0 %v1993
  %2025 = vmatprep.subr.mxu0 0.0
  %2026 = vmatpush1.msra.mxu0 %v1992
  %2027 = vmatprep.subr.mxu0 0.0
  %2028 = vmatpush1.msra.mxu0 %v1991
  %2029 = vmatprep.subr.mxu0 0.0
  %2030 = vmatpush1.msra.mxu0 %v1990
  %2031 = vmatprep.subr.mxu0 0.0
  %2032 = vmatpush1.msra.mxu0 %v1989
  %2033 = vmatprep.subr.mxu0 0.0
  %2034 = vmatpush1.msra.mxu0 %v1988
  %2035 = vmatprep.subr.mxu0 0.0
  %2036 = vmatpush1.msra.mxu0 %v1987
  %2037 = vmatprep.subr.mxu0 0.0
  %2038 = vmatpush1.msra.mxu0 %v1986
  %2039 = vmatprep.subr.mxu0 0.0
  %2040 = vmatpush2.msra.mxu0 0.0
  %2041 = vmatprep.subr.mxu0 0.0
  %2042 = vmatpush2.msra.mxu0 0.0
  %2043 = vmatprep.subr.mxu0 0.0
  %2044 = vmatpush2.msra.mxu0 0.0
  %2045 = vmatprep.subr.mxu0 0.0
  %2046 = vmatpush2.msra.mxu0 0.0
  %2047 = vmatprep.subr.mxu0 0.0
  %2048 = vmatpush2.msra.mxu0 0.0
  %2049 = vmatprep.subr.mxu0 0.0
  %2050 = vmatpush2.msra.mxu0 0.0
  %2051 = vmatprep.subr.mxu0 0.0
  %2052 = vmatpush2.msra.mxu0 0.0
  %2053 = vmatprep.subr.mxu0 0.0
  %2054 = vmatpush2.msra.mxu0 0.0
  %2055 = vmatprep.subr.mxu0 0.0
  %2056 = vmatpush2.msra.mxu0 0.0
  %2057 = vmatprep.subr.mxu0 0.0
  %2058 = vmatpush2.msra.mxu0 0.0
  %2059 = vmatprep.subr.mxu0 0.0
  %2060 = vmatpush2.msra.mxu0 0.0
  %2061 = vmatprep.subr.mxu0 0.0
  %2062 = vmatpush2.msra.mxu0 0.0
  %2063 = vmatprep.subr.mxu0 0.0
  %2064 = vmatpush2.msra.mxu0 0.0
  %2065 = vmatprep.subr.mxu0 0.0
  %2066 = vmatpush2.msra.mxu0 0.0
  %2067 = vmatprep.subr.mxu0 0.0
  %2068 = vmatpush2.msra.mxu0 0.0
  %2069 = vmatprep.subr.mxu0 0.0
  %2070 = vmatpush2.msra.mxu0 %v2002
  %2071 = vmatprep.mubr.f32.mxu0 %v2005
  %2072 = vmatmul.mubr.f32.gmra.mxu0 %v1984
  %v2073 = vpop.f32.mrf.mxu0
  %v2074 = vadd.f32 0.0, %v2073
  %v2075 = vpop.f32.mrf.mxu0
  %2076 = vdwg.mxu0
  %vm2077 = vcmask 130048
  %2078 = vst.msk [vmem:[%s7] sm:$0xff] %vm2077, %v2074
  // Predicated region
  $region30: #{depthwise_separable_forward.1} parent=0 // pred_check
    _
  $region31: #{depthwise_separable_forward.1} parent=0 // pred_check_branch
    %2080 = sbr.rel (0) target = $region33
  $region32: #{depthwise_separable_forward.1} parent=0 // pred_region
    _
  $region33: #{depthwise_separable_forward.1} parent=0 // pred_fallthru
    _
  // Predicated region
  $region34: #{depthwise_separable_forward.1} parent=0 // pred_check
    _
  $region35: #{depthwise_separable_forward.1} parent=0 // pred_check_branch
    %2082 = sbr.rel (0) target = $region37
  $region36: #{depthwise_separable_forward.1} parent=0 // pred_region
    _
  $region37: #{depthwise_separable_forward.1} parent=0 // pred_fallthru
    _

</llo_original>
